<compile_context>
chip_gen: v7x
topology: tpu7x:2x2x1
jax: 0.10.0
libtpu: 0.0.40
codegen_flags: <defaults>
</compile_context>

<pallas_src>
import numpy as np
import jax
import jax.numpy as jnp
from jax.experimental import pallas as pl
from jax.experimental.pallas import tpu as pltpu

TAU = 0.1
A_CONST = -1e-06
B_CONST = 1.0

_SMEM = pl.BlockSpec(memory_space=pltpu.MemorySpace.SMEM)


def _round_up(x, m):
    return ((x + m - 1) // m) * m


# ---------------------------------------------------------------------------
# Pallas kernels
# ---------------------------------------------------------------------------
def edge_mlp_kernel(ft_ref, w1_ref, b1_ref, w2_ref, shift_ref, o_ref):
    """Edgedropping MLP, lane-dense (edges on the 128-lane axis), tiled over lanes.

    ft     : [14, TE]  transposed per-row feature vectors (one lane tile)
    w1     : [7, 14]   (torch [out, in] layout -> used directly as W1 @ ft)
    b1     : [7, 1]
    w2     : [1, 7]    already pre-scaled by 1/tau in the wrapper
    shift  : (1, 1) SMEM scalar = (b2 + fixed logistic noise) / tau
    output : [1, TE] = sigmoid(w2 @ relu(W1 @ ft + b1) + shift) * (b - a) + a
    """
    # These two dots are MXU-starved (M=7 / M=1, K=14); the kernel is DMA-dominated,
    # so we keep jnp.dot rather than unrolled VPU FMAs.
    ft = ft_ref[...]                                                        # [14, TE]
    h = jnp.dot(w1_ref[...], ft, preferred_element_type=jnp.float32) + b1_ref[...]
    h = jnp.maximum(h, 0.0)                                                 # ReLU [7, TE]
    logits = jnp.dot(w2_ref[...], h, preferred_element_type=jnp.float32)    # [1, TE]
    ew = jax.nn.sigmoid(logits + shift_ref[0, 0])
    o_ref[...] = ew * (B_CONST - A_CONST) + A_CONST


def gcn_prelu_kernel(a_ref, y_ref, di_ref, b_ref, alpha_ref, o_ref, acc_ref):
    """Fused GCNConv + PReLU: out = prelu( d_i * (A @ Y) + b ), Y = d_k * (X @ W) precomputed.

    grid = (row tiles of A : parallel, reduction tiles over A columns : arbitrary)
    A and Y tiles are bf16; accumulation is f32 in VMEM scratch.
    """
    k = pl.program_id(1)

    @pl.when(k == 0)
    def _():
        acc_ref[...] = jnp.zeros_like(acc_ref)

    acc_ref[...] += jnp.dot(a_ref[...], y_ref[...],
                            preferred_element_type=jnp.float32)

    @pl.when(k == pl.num_programs(1) - 1)
    def _():
        out = acc_ref[...] * di_ref[...] + b_ref[...]       # left D^{-1/2} + bias
        alpha = alpha_ref[0, 0]
        o_ref[...] = jnp.where(out > 0, out, alpha * out).astype(o_ref.dtype)


# ---------------------------------------------------------------------------
# Pallas wrappers
# ---------------------------------------------------------------------------
def edge_drop_values(ew, count, p, *, lane_tile=4096):
    """Per reshaped-row scaled-sigmoid values, [E].  Rows >= count are garbage and must
    be masked by the caller (they always are, via `rows < count`)."""
    E = ew.shape[1]
    te = min(lane_tile, _round_up(E, 128))                  # lane tile (multiple of 128)
    Ep = _round_up(E, te)                                   # padded, multiple of te

    # Emulate `ew[:, :count].reshape(-1, 14)` (row-major) directly in transposed,
    # lane-dense, padded layout with ONE gather:
    #   feats_t[c, e] = ew[(e*14+c) // count, (e*14+c) % count]
    safe = jnp.maximum(count, 1)
    c_idx = jax.lax.broadcasted_iota(jnp.int32, (14, Ep), 0)
    e_idx = jax.lax.broadcasted_iota(jnp.int32, (14, Ep), 1)
    flat = e_idx * 14 + c_idx
    f_idx = jnp.minimum(flat // safe, 13)                   # clamp only hits garbage rows
    j_idx = flat % safe                                     # always < count <= E
    feats_t = ew[f_idx, j_idx]                              # [14, Ep]

    inv_tau = np.float32(1.0 / TAU)
    w2 = p["ed_w2"] * inv_tau                               # fold 1/tau into the last linear
    shift = ((p["ed_b2"] + p["ed_rnd"]) * inv_tau).reshape(1, 1)

    out = pl.pallas_call(
        edge_mlp_kernel,
        out_shape=jax.ShapeDtypeStruct((1, Ep), jnp.float32),
        grid=(Ep // te,),
        in_specs=[
            pl.BlockSpec((14, te), lambda e: (0, e)),       # feature slab, tiled on lanes
            pl.BlockSpec((7, 14), lambda e: (0, 0)),        # W1 (resident)
            pl.BlockSpec((7, 1), lambda e: (0, 0)),         # b1
            pl.BlockSpec((1, 7), lambda e: (0, 0)),         # W2 / tau
            _SMEM,                                          # shift scalar
        ],
        out_specs=pl.BlockSpec((1, te), lambda e: (0, e)),
        compiler_params=pltpu.CompilerParams(
            dimension_semantics=("parallel",)),
    )(feats_t, p["ed_w1"], p["ed_b1"].reshape(7, 1), w2, shift)
    return out[0, :E]


def gcn_prelu(a, d, y, b, alpha, *, tile=512):
    """out = prelu( d * (A @ Y) + b ) with A, Y streamed as bf16 and an f32 accumulator.

    A/d/Y/out are padded to a multiple of the tile so the (row, reduction) pipeline is
    always real and VMEM stays bounded for any N (no `tm = N` fallback)."""
    N = a.shape[0]
    c_out = y.shape[1]

    tm = min(tile, _round_up(N, 128))                       # (8,128)-legal tile <= `tile`
    tk = tm
    Np = _round_up(N, tm)
    if Np != N:
        pad = Np - N
        a = jnp.pad(a, ((0, pad), (0, pad)))                # padded rows/cols are zero
        d = jnp.pad(d, ((0, pad), (0, 0)))
        y = jnp.pad(y, ((0, pad), (0, 0)))
    grid = (Np // tm, Np // tk)                             # reduction axis last

    out = pl.pallas_call(
        gcn_prelu_kernel,
        out_shape=jax.ShapeDtypeStruct((Np, c_out), jnp.float32),
        grid=grid,
        in_specs=[
            pl.BlockSpec((tm, tk), lambda i, k: (i, k)),    # A tile (bf16)
            pl.BlockSpec((tk, c_out), lambda i, k: (k, 0)), # Y tile (bf16)
            pl.BlockSpec((tm, 1), lambda i, k: (i, 0)),     # left D^{-1/2}
            pl.BlockSpec((1, c_out), lambda i, k: (0, 0)),  # bias (resident)
            _SMEM,                                          # PReLU alpha (1,1)
        ],
        out_specs=pl.BlockSpec((tm, c_out), lambda i, k: (i, 0)),
        scratch_shapes=[pltpu.VMEM((tm, c_out), jnp.float32)],
        compiler_params=pltpu.CompilerParams(
            dimension_semantics=("parallel", "arbitrary"),  # row axis shards across TCs (v7x)
            vmem_limit_bytes=32 * 1024 * 1024),             # explicit budget when raising tiles
    )(a.astype(jnp.bfloat16), y.astype(jnp.bfloat16), d,
      b.reshape(1, c_out), alpha.reshape(1, 1))
    return out[:N]


# ---------------------------------------------------------------------------
# Whole forward (single jit, no host syncs, fixed shapes)
# ---------------------------------------------------------------------------
def encoder_forward(x, edge_index, edge_weight, params, num_nodes):
    """Mirrors Encoder.forward: per layer Edgedropping -> GCNConv -> PReLU."""
    E = edge_weight.shape[1]
    rows = jnp.arange(E, dtype=jnp.int32)
    ei = edge_index.astype(jnp.int32)
    ew = edge_weight.astype(jnp.float32)
    count = jnp.int32(E)                                    # number of valid edges
    eye = jnp.eye(num_nodes, dtype=jnp.float32)

    for p in params:
        # ---- Edgedropping ----
        vals = edge_drop_values(ew, count, p)               # [E]
        keep = (vals > 0.0) & (rows < count)

        # Stable partition (kept edges first, original order preserved) via prefix sums —
        # the fixed-shape, O(E) equivalent of torch's `temp[:, edge_mask]`.
        # TODO(synk): this compaction + the one-hot adjacency below stay in jnp (fused by
        # XLA inside the same jit); dynamic-count gather/scatter has no clean tile-level
        # Pallas form.
        new_count = jnp.sum(keep.astype(jnp.int32))
        kpos = jnp.cumsum(keep.astype(jnp.int32)) - 1
        dpos = jnp.cumsum(jnp.logical_not(keep).astype(jnp.int32)) - 1
        dest = jnp.where(keep, kpos, new_count + dpos)      # permutation of 0..E-1
        ei = jnp.zeros_like(ei).at[:, dest].set(ei)
        ew = jnp.zeros_like(ew).at[:, dest].set(ew)
        count = new_count

        # ---- GCNConv adjacency (edge_weight=None -> weight 1, self loops, sym norm) ----
        # One-hot MXU matmul instead of an XLA scatter-add (which serializes per edge).
        valid = (rows < count).astype(jnp.float32)          # dropped edges contribute 0
        src_oh = jax.nn.one_hot(ei[0], num_nodes, dtype=jnp.float32)      # [E, N]
        dst_oh = jax.nn.one_hot(ei[1], num_nodes, dtype=jnp.float32)      # [E, N]
        A = jnp.dot((dst_oh * valid[:, None]).T, src_oh)    # A[target, source]
        A = A + eye                                          # self loops
        d = jax.lax.rsqrt(jnp.sum(A, axis=1)).reshape(num_nodes, 1)       # deg^{-1/2} >= 1

        # ---- Y = D^{-1/2} (X @ W): tiny matmul, computed once (not per A tile) ----
        y = d * jnp.dot(x, p["gcn_w"])

        # ---- (D^{-1/2} A) @ Y + b -> PReLU (fused Pallas kernel) ----
        x = gcn_prelu(A, d, y, p["gcn_b"], p["alpha"])
    return x


# ---------------------------------------------------------------------------
# Deterministic parameter init (torch-style)
# ---------------------------------------------------------------------------
def init_params(key, layer_config):
    params = []
    for i in range(1, len(layer_config)):
        c_in, c_out = layer_config[i - 1], layer_config[i]
        keys = jax.random.split(key, 8)
        key = keys[0]
        lim1 = 1.0 / np.sqrt(14.0)
        lim2 = 1.0 / np.sqrt(7.0)
        u = jax.random.uniform(keys[5], (), jnp.float32, 1e-4, 1.0 - 1e-4)
        rnd = jnp.log(u) - jnp.log(1.0 - u)                 # fixed logistic noise
        params.append({
            # Edgedropping MLP in torch [out, in] layout (used as W @ feats^T in-kernel)
            "ed_w1": jax.random.uniform(keys[1], (7, 14), jnp.float32, -lim1, lim1),
            "ed_b1": jax.random.uniform(keys[2], (7,), jnp.float32, -lim1, lim1),
            "ed_w2": jax.random.uniform(keys[3], (1, 7), jnp.float32, -lim2, lim2),
            "ed_b2": jax.random.uniform(keys[4], (), jnp.float32, -lim2, lim2),
            "ed_rnd": rnd.astype(jnp.float32),
            # GCNConv weight [in, out] + bias, PReLU alpha (torch default 0.25)
            "gcn_w": jax.random.normal(keys[6], (c_in, c_out), jnp.float32)
                     / np.sqrt(c_in),
            "gcn_b": jnp.zeros((c_out,), jnp.float32),
            "alpha": jnp.array(0.25, dtype=jnp.float32),
        })
    return params


# ---------------------------------------------------------------------------
if __name__ == "__main__":
    key = jax.random.PRNGKey(0)
    N, E = 16, 40
    layer_config = [32, 32, 16]

    k_x, k_src, k_off, k_ew, k_par = jax.random.split(key, 5)
    x = jax.random.normal(k_x, (N, layer_config[0]), jnp.float32)
    src = jax.random.randint(k_src, (E,), 0, N, dtype=jnp.int32)
    off = jax.random.randint(k_off, (E,), 1, N, dtype=jnp.int32)
    dst = (src + off) % N                                   # no self loops
    edge_index = jnp.stack([src, dst], axis=0)              # [2, E]
    edge_weight = jax.random.uniform(k_ew, (14, E), jnp.float32)

    params = init_params(k_par, layer_config)

    fwd = jax.jit(encoder_forward, static_argnames=("num_nodes",))
    out = fwd(x, edge_index, edge_weight, params, num_nodes=N)
    out = jax.block_until_ready(out)

    assert out.shape == (N, layer_config[-1])
    assert bool(jnp.all(jnp.isfinite(out)))
    print("KERNEL_OK")
</pallas_src>

<mosaic_0001>
module attributes {stable_mosaic.version = 11 : i64} {
  func.func @edge_mlp_kernel(%arg0: i32, %arg1: memref<14x128xf32, #tpu.memory_space<vmem>>, %arg2: memref<7x14xf32, #tpu.memory_space<vmem>>, %arg3: memref<7x1xf32, #tpu.memory_space<vmem>>, %arg4: memref<1x7xf32, #tpu.memory_space<vmem>>, %arg5: memref<1x1xf32, #tpu.memory_space<smem>>, %arg6: memref<1x128xf32, #tpu.memory_space<vmem>>) attributes {dimension_semantics = [#tpu.dimension_semantics<parallel>], iteration_bounds = array<i64: 1>, scalar_prefetch = 0 : i64, scratch_operands = 0 : i64, tpu.core_type = #tpu.core_type<tc>, window_params = [{transform_indices = @transform_0, window_bounds = array<i64: 14, 128>}, {pipeline_mode = #tpu.pipeline_mode<synchronous>, transform_indices = @transform_1, window_bounds = array<i64: 7, 14>}, {pipeline_mode = #tpu.pipeline_mode<synchronous>, transform_indices = @transform_2, window_bounds = array<i64: 7, 1>}, {pipeline_mode = #tpu.pipeline_mode<synchronous>, transform_indices = @transform_3, window_bounds = array<i64: 1, 7>}, {transform_indices = @transform_4, window_bounds = array<i64: 1, 1>}, {transform_indices = @transform_5, window_bounds = array<i64: 1, 128>}]} {
    %c0 = arith.constant 0 : index
    %c0_0 = arith.constant 0 : index
    %0 = vector.load %arg1[%c0, %c0_0] : memref<14x128xf32, #tpu.memory_space<vmem>>, vector<14x128xf32>
    %c0_1 = arith.constant 0 : index
    %c0_2 = arith.constant 0 : index
    %1 = vector.load %arg2[%c0_1, %c0_2] : memref<7x14xf32, #tpu.memory_space<vmem>>, vector<7x14xf32>
    %cst = arith.constant dense<0.000000e+00> : vector<7x128xf32>
    %2 = tpu.matmul %1, %0, %cst {dimension_numbers = #tpu.dot_dimension_numbers<[1], [0], [0], [1], [0, 0, 1, 1], [], []>} : vector<7x14xf32>, vector<14x128xf32>, vector<7x128xf32> -> vector<7x128xf32>
    %c0_3 = arith.constant 0 : index
    %c0_4 = arith.constant 0 : index
    %3 = vector.load %arg3[%c0_3, %c0_4] : memref<7x1xf32, #tpu.memory_space<vmem>>, vector<7x1xf32>
    %4 = vector.broadcast %3 : vector<7x1xf32> to vector<7x128xf32>
    %5 = arith.addf %2, %4 : vector<7x128xf32>
    %cst_5 = arith.constant 0.000000e+00 : f32
    %6 = vector.broadcast %cst_5 : f32 to vector<7x128xf32>
    %7 = arith.maximumf %5, %6 : vector<7x128xf32>
    %c0_6 = arith.constant 0 : index
    %c0_7 = arith.constant 0 : index
    %8 = vector.load %arg4[%c0_6, %c0_7] : memref<1x7xf32, #tpu.memory_space<vmem>>, vector<1x7xf32>
    %cst_8 = arith.constant dense<0.000000e+00> : vector<1x128xf32>
    %9 = tpu.matmul %8, %7, %cst_8 {dimension_numbers = #tpu.dot_dimension_numbers<[1], [0], [0], [1], [0, 0, 1, 1], [], []>} : vector<1x7xf32>, vector<7x128xf32>, vector<1x128xf32> -> vector<1x128xf32>
    %c0_9 = arith.constant 0 : index
    %c0_10 = arith.constant 0 : index
    %10 = memref.load %arg5[%c0_9, %c0_10] : memref<1x1xf32, #tpu.memory_space<smem>>
    %11 = vector.broadcast %10 : f32 to vector<1x128xf32>
    %12 = arith.addf %9, %11 : vector<1x128xf32>
    %13 = arith.negf %12 : vector<1x128xf32>
    %14 = math.exp %13 : vector<1x128xf32>
    %cst_11 = arith.constant 1.000000e+00 : f32
    %15 = vector.broadcast %cst_11 : f32 to vector<1x128xf32>
    %16 = arith.addf %15, %14 : vector<1x128xf32>
    %17 = arith.divf %15, %16 : vector<1x128xf32>
    %cst_12 = arith.constant 1.00000095 : f32
    %18 = vector.broadcast %cst_12 : f32 to vector<1x128xf32>
    %19 = arith.mulf %17, %18 : vector<1x128xf32>
    %cst_13 = arith.constant -9.99999997E-7 : f32
    %20 = vector.broadcast %cst_13 : f32 to vector<1x128xf32>
    %21 = arith.addf %19, %20 : vector<1x128xf32>
    %c0_14 = arith.constant 0 : index
    %c0_15 = arith.constant 0 : index
    %22 = vector.load %arg6[%c0_14, %c0_15] : memref<1x128xf32, #tpu.memory_space<vmem>>, vector<1x128xf32>
    tpu.vector_store %arg6[%c0_14, %c0_15], %21 {strides = array<i32>} : memref<1x128xf32, #tpu.memory_space<vmem>>, vector<1x128xf32>,
    return
  }
  func.func @transform_0(%arg0: i32) -> (i32, i32) {
    %c0_i32 = arith.constant 0 : i32
    %c0_i32_0 = arith.constant 0 : i32
    return %c0_i32, %arg0 : i32, i32
  }
  func.func @transform_1(%arg0: i32) -> (i32, i32) {
    %c0_i32 = arith.constant 0 : i32
    %c0_i32_0 = arith.constant 0 : i32
    %c0_i32_1 = arith.constant 0 : i32
    return %c0_i32, %c0_i32_0 : i32, i32
  }
  func.func @transform_2(%arg0: i32) -> (i32, i32) {
    %c0_i32 = arith.constant 0 : i32
    %c0_i32_0 = arith.constant 0 : i32
    %c0_i32_1 = arith.constant 0 : i32
    return %c0_i32, %c0_i32_0 : i32, i32
  }
  func.func @transform_3(%arg0: i32) -> (i32, i32) {
    %c0_i32 = arith.constant 0 : i32
    %c0_i32_0 = arith.constant 0 : i32
    %c0_i32_1 = arith.constant 0 : i32
    return %c0_i32, %c0_i32_0 : i32, i32
  }
  func.func @transform_4(%arg0: i32) -> (i32, i32) {
    %c0_i32 = arith.constant 0 : i32
    %c0_i32_0 = arith.constant 0 : i32
    %c0_i32_1 = arith.constant 0 : i32
    return %c0_i32, %c0_i32_0 : i32, i32
  }
  func.func @transform_5(%arg0: i32) -> (i32, i32) {
    %c0_i32 = arith.constant 0 : i32
    %c0_i32_0 = arith.constant 0 : i32
    return %c0_i32, %arg0 : i32, i32
  }
}

module attributes {stable_mosaic.version = 11 : i64} {
  func.func @gcn_prelu_kernel(%arg0: i32, %arg1: i32, %arg2: memref<128x128xbf16, #tpu.memory_space<vmem>>, %arg3: memref<128x32xbf16, #tpu.memory_space<vmem>>, %arg4: memref<128x1xf32, #tpu.memory_space<vmem>>, %arg5: memref<1x32xf32, #tpu.memory_space<vmem>>, %arg6: memref<1x1xf32, #tpu.memory_space<smem>>, %arg7: memref<128x32xf32, #tpu.memory_space<vmem>>, %arg8: memref<128x32xf32, #tpu.memory_space<vmem>>) attributes {dimension_semantics = [#tpu.dimension_semantics<parallel>, #tpu.dimension_semantics<arbitrary>], iteration_bounds = array<i64: 1, 1>, scalar_prefetch = 0 : i64, scratch_operands = 1 : i64, tpu.core_type = #tpu.core_type<tc>, window_params = [{transform_indices = @transform_0, window_bounds = array<i64: 128, 128>}, {transform_indices = @transform_1, window_bounds = array<i64: 128, 32>}, {transform_indices = @transform_2, window_bounds = array<i64: 128, 1>}, {pipeline_mode = #tpu.pipeline_mode<synchronous>, transform_indices = @transform_3, window_bounds = array<i64: 1, 32>}, {transform_indices = @transform_4, window_bounds = array<i64: 1, 1>}, {transform_indices = @transform_5, window_bounds = array<i64: 128, 32>}]} {
    %c0_i32 = arith.constant 0 : i32
    %0 = arith.cmpi eq, %arg1, %c0_i32 : i32
    %1 = arith.extui %0 : i1 to i32
    %c0_i32_0 = arith.constant 0 : i32
    %2 = arith.cmpi ne, %1, %c0_i32_0 : i32
    scf.if %2 {
      %cst_10 = arith.constant 0.000000e+00 : f32
      %12 = vector.broadcast %cst_10 : f32 to vector<128x32xf32>
      %c0_11 = arith.constant 0 : index
      %c0_12 = arith.constant 0 : index
      %13 = vector.load %arg8[%c0_11, %c0_12] : memref<128x32xf32, #tpu.memory_space<vmem>>, vector<128x32xf32>
      tpu.vector_store %arg8[%c0_11, %c0_12], %12 {strides = array<i32>} : memref<128x32xf32, #tpu.memory_space<vmem>>, vector<128x32xf32>,
    } else {
    }
    %c0 = arith.constant 0 : index
    %c0_1 = arith.constant 0 : index
    %3 = vector.load %arg8[%c0, %c0_1] : memref<128x32xf32, #tpu.memory_space<vmem>>, vector<128x32xf32>
    %c0_2 = arith.constant 0 : index
    %c0_3 = arith.constant 0 : index
    %4 = vector.load %arg2[%c0_2, %c0_3] : memref<128x128xbf16, #tpu.memory_space<vmem>>, vector<128x128xbf16>
    %c0_4 = arith.constant 0 : index
    %c0_5 = arith.constant 0 : index
    %5 = vector.load %arg3[%c0_4, %c0_5] : memref<128x32xbf16, #tpu.memory_space<vmem>>, vector<128x32xbf16>
    %cst = arith.constant dense<0.000000e+00> : vector<128x32xf32>
    %6 = tpu.matmul %4, %5, %cst {dimension_numbers = #tpu.dot_dimension_numbers<[1], [0], [0], [1], [0, 0, 1, 1], [], []>} : vector<128x128xbf16>, vector<128x32xbf16>, vector<128x32xf32> -> vector<128x32xf32>
    %7 = arith.addf %3, %6 : vector<128x32xf32>
    %c0_6 = arith.constant 0 : index
    %c0_7 = arith.constant 0 : index
    %8 = vector.load %arg8[%c0_6, %c0_7] : memref<128x32xf32, #tpu.memory_space<vmem>>, vector<128x32xf32>
    tpu.vector_store %arg8[%c0_6, %c0_7], %7 {strides = array<i32>} : memref<128x32xf32, #tpu.memory_space<vmem>>, vector<128x32xf32>,
    %c0_i32_8 = arith.constant 0 : i32
    %9 = arith.cmpi eq, %arg1, %c0_i32_8 : i32
    %10 = arith.extui %9 : i1 to i32
    %c0_i32_9 = arith.constant 0 : i32
    %11 = arith.cmpi ne, %10, %c0_i32_9 : i32
    scf.if %11 {
      %c0_10 = arith.constant 0 : index
      %c0_11 = arith.constant 0 : index
      %12 = vector.load %arg8[%c0_10, %c0_11] : memref<128x32xf32, #tpu.memory_space<vmem>>, vector<128x32xf32>
      %c0_12 = arith.constant 0 : index
      %c0_13 = arith.constant 0 : index
      %13 = vector.load %arg4[%c0_12, %c0_13] : memref<128x1xf32, #tpu.memory_space<vmem>>, vector<128x1xf32>
      %14 = vector.broadcast %13 : vector<128x1xf32> to vector<128x32xf32>
      %15 = arith.mulf %12, %14 : vector<128x32xf32>
      %c0_14 = arith.constant 0 : index
      %c0_15 = arith.constant 0 : index
      %16 = vector.load %arg5[%c0_14, %c0_15] : memref<1x32xf32, #tpu.memory_space<vmem>>, vector<1x32xf32>
      %17 = vector.broadcast %16 : vector<1x32xf32> to vector<128x32xf32>
      %18 = arith.addf %15, %17 : vector<128x32xf32>
      %c0_16 = arith.constant 0 : index
      %c0_17 = arith.constant 0 : index
      %19 = memref.load %arg6[%c0_16, %c0_17] : memref<1x1xf32, #tpu.memory_space<smem>>
      %cst_18 = arith.constant 0.000000e+00 : f32
      %20 = vector.broadcast %cst_18 : f32 to vector<128x32xf32>
      %21 = arith.cmpf ogt, %18, %20 : vector<128x32xf32>
      %22 = vector.broadcast %19 : f32 to vector<128x32xf32>
      %23 = arith.mulf %22, %18 : vector<128x32xf32>
      %24 = arith.select %21, %18, %23 : vector<128x32xi1>, vector<128x32xf32>
      %c0_19 = arith.constant 0 : index
      %c0_20 = arith.constant 0 : index
      %25 = vector.load %arg7[%c0_19, %c0_20] : memref<128x32xf32, #tpu.memory_space<vmem>>, vector<128x32xf32>
      tpu.vector_store %arg7[%c0_19, %c0_20], %24 {strides = array<i32>} : memref<128x32xf32, #tpu.memory_space<vmem>>, vector<128x32xf32>,
    } else {
    }
    return
  }
  func.func @transform_0(%arg0: i32, %arg1: i32) -> (i32, i32) {
    %c0_i32 = arith.constant 0 : i32
    return %arg0, %arg1 : i32, i32
  }
  func.func @transform_1(%arg0: i32, %arg1: i32) -> (i32, i32) {
    %c0_i32 = arith.constant 0 : i32
    %c0_i32_0 = arith.constant 0 : i32
    return %arg1, %c0_i32 : i32, i32
  }
  func.func @transform_2(%arg0: i32, %arg1: i32) -> (i32, i32) {
    %c0_i32 = arith.constant 0 : i32
    %c0_i32_0 = arith.constant 0 : i32
    return %arg0, %c0_i32 : i32, i32
  }
  func.func @transform_3(%arg0: i32, %arg1: i32) -> (i32, i32) {
    %c0_i32 = arith.constant 0 : i32
    %c0_i32_0 = arith.constant 0 : i32
    %c0_i32_1 = arith.constant 0 : i32
    return %c0_i32, %c0_i32_0 : i32, i32
  }
  func.func @transform_4(%arg0: i32, %arg1: i32) -> (i32, i32) {
    %c0_i32 = arith.constant 0 : i32
    %c0_i32_0 = arith.constant 0 : i32
    %c0_i32_1 = arith.constant 0 : i32
    return %c0_i32, %c0_i32_0 : i32, i32
  }
  func.func @transform_5(%arg0: i32, %arg1: i32) -> (i32, i32) {
    %c0_i32 = arith.constant 0 : i32
    %c0_i32_0 = arith.constant 0 : i32
    return %arg0, %c0_i32 : i32, i32
  }
}

module attributes {stable_mosaic.version = 11 : i64} {
  func.func @gcn_prelu_kernel(%arg0: i32, %arg1: i32, %arg2: memref<128x128xbf16, #tpu.memory_space<vmem>>, %arg3: memref<128x16xbf16, #tpu.memory_space<vmem>>, %arg4: memref<128x1xf32, #tpu.memory_space<vmem>>, %arg5: memref<1x16xf32, #tpu.memory_space<vmem>>, %arg6: memref<1x1xf32, #tpu.memory_space<smem>>, %arg7: memref<128x16xf32, #tpu.memory_space<vmem>>, %arg8: memref<128x16xf32, #tpu.memory_space<vmem>>) attributes {dimension_semantics = [#tpu.dimension_semantics<parallel>, #tpu.dimension_semantics<arbitrary>], iteration_bounds = array<i64: 1, 1>, scalar_prefetch = 0 : i64, scratch_operands = 1 : i64, tpu.core_type = #tpu.core_type<tc>, window_params = [{transform_indices = @transform_0, window_bounds = array<i64: 128, 128>}, {transform_indices = @transform_1, window_bounds = array<i64: 128, 16>}, {transform_indices = @transform_2, window_bounds = array<i64: 128, 1>}, {pipeline_mode = #tpu.pipeline_mode<synchronous>, transform_indices = @transform_3, window_bounds = array<i64: 1, 16>}, {transform_indices = @transform_4, window_bounds = array<i64: 1, 1>}, {transform_indices = @transform_5, window_bounds = array<i64: 128, 16>}]} {
    %c0_i32 = arith.constant 0 : i32
    %0 = arith.cmpi eq, %arg1, %c0_i32 : i32
    %1 = arith.extui %0 : i1 to i32
    %c0_i32_0 = arith.constant 0 : i32
    %2 = arith.cmpi ne, %1, %c0_i32_0 : i32
    scf.if %2 {
      %cst_10 = arith.constant 0.000000e+00 : f32
      %12 = vector.broadcast %cst_10 : f32 to vector<128x16xf32>
      %c0_11 = arith.constant 0 : index
      %c0_12 = arith.constant 0 : index
      %13 = vector.load %arg8[%c0_11, %c0_12] : memref<128x16xf32, #tpu.memory_space<vmem>>, vector<128x16xf32>
      tpu.vector_store %arg8[%c0_11, %c0_12], %12 {strides = array<i32>} : memref<128x16xf32, #tpu.memory_space<vmem>>, vector<128x16xf32>,
    } else {
    }
    %c0 = arith.constant 0 : index
    %c0_1 = arith.constant 0 : index
    %3 = vector.load %arg8[%c0, %c0_1] : memref<128x16xf32, #tpu.memory_space<vmem>>, vector<128x16xf32>
    %c0_2 = arith.constant 0 : index
    %c0_3 = arith.constant 0 : index
    %4 = vector.load %arg2[%c0_2, %c0_3] : memref<128x128xbf16, #tpu.memory_space<vmem>>, vector<128x128xbf16>
    %c0_4 = arith.constant 0 : index
    %c0_5 = arith.constant 0 : index
    %5 = vector.load %arg3[%c0_4, %c0_5] : memref<128x16xbf16, #tpu.memory_space<vmem>>, vector<128x16xbf16>
    %cst = arith.constant dense<0.000000e+00> : vector<128x16xf32>
    %6 = tpu.matmul %4, %5, %cst {dimension_numbers = #tpu.dot_dimension_numbers<[1], [0], [0], [1], [0, 0, 1, 1], [], []>} : vector<128x128xbf16>, vector<128x16xbf16>, vector<128x16xf32> -> vector<128x16xf32>
    %7 = arith.addf %3, %6 : vector<128x16xf32>
    %c0_6 = arith.constant 0 : index
    %c0_7 = arith.constant 0 : index
    %8 = vector.load %arg8[%c0_6, %c0_7] : memref<128x16xf32, #tpu.memory_space<vmem>>, vector<128x16xf32>
    tpu.vector_store %arg8[%c0_6, %c0_7], %7 {strides = array<i32>} : memref<128x16xf32, #tpu.memory_space<vmem>>, vector<128x16xf32>,
    %c0_i32_8 = arith.constant 0 : i32
    %9 = arith.cmpi eq, %arg1, %c0_i32_8 : i32
    %10 = arith.extui %9 : i1 to i32
    %c0_i32_9 = arith.constant 0 : i32
    %11 = arith.cmpi ne, %10, %c0_i32_9 : i32
    scf.if %11 {
      %c0_10 = arith.constant 0 : index
      %c0_11 = arith.constant 0 : index
      %12 = vector.load %arg8[%c0_10, %c0_11] : memref<128x16xf32, #tpu.memory_space<vmem>>, vector<128x16xf32>
      %c0_12 = arith.constant 0 : index
      %c0_13 = arith.constant 0 : index
      %13 = vector.load %arg4[%c0_12, %c0_13] : memref<128x1xf32, #tpu.memory_space<vmem>>, vector<128x1xf32>
      %14 = vector.broadcast %13 : vector<128x1xf32> to vector<128x16xf32>
      %15 = arith.mulf %12, %14 : vector<128x16xf32>
      %c0_14 = arith.constant 0 : index
      %c0_15 = arith.constant 0 : index
      %16 = vector.load %arg5[%c0_14, %c0_15] : memref<1x16xf32, #tpu.memory_space<vmem>>, vector<1x16xf32>
      %17 = vector.broadcast %16 : vector<1x16xf32> to vector<128x16xf32>
      %18 = arith.addf %15, %17 : vector<128x16xf32>
      %c0_16 = arith.constant 0 : index
      %c0_17 = arith.constant 0 : index
      %19 = memref.load %arg6[%c0_16, %c0_17] : memref<1x1xf32, #tpu.memory_space<smem>>
      %cst_18 = arith.constant 0.000000e+00 : f32
      %20 = vector.broadcast %cst_18 : f32 to vector<128x16xf32>
      %21 = arith.cmpf ogt, %18, %20 : vector<128x16xf32>
      %22 = vector.broadcast %19 : f32 to vector<128x16xf32>
      %23 = arith.mulf %22, %18 : vector<128x16xf32>
      %24 = arith.select %21, %18, %23 : vector<128x16xi1>, vector<128x16xf32>
      %c0_19 = arith.constant 0 : index
      %c0_20 = arith.constant 0 : index
      %25 = vector.load %arg7[%c0_19, %c0_20] : memref<128x16xf32, #tpu.memory_space<vmem>>, vector<128x16xf32>
      tpu.vector_store %arg7[%c0_19, %c0_20], %24 {strides = array<i32>} : memref<128x16xf32, #tpu.memory_space<vmem>>, vector<128x16xf32>,
    } else {
    }
    return
  }
  func.func @transform_0(%arg0: i32, %arg1: i32) -> (i32, i32) {
    %c0_i32 = arith.constant 0 : i32
    return %arg0, %arg1 : i32, i32
  }
  func.func @transform_1(%arg0: i32, %arg1: i32) -> (i32, i32) {
    %c0_i32 = arith.constant 0 : i32
    %c0_i32_0 = arith.constant 0 : i32
    return %arg1, %c0_i32 : i32, i32
  }
  func.func @transform_2(%arg0: i32, %arg1: i32) -> (i32, i32) {
    %c0_i32 = arith.constant 0 : i32
    %c0_i32_0 = arith.constant 0 : i32
    return %arg0, %c0_i32 : i32, i32
  }
  func.func @transform_3(%arg0: i32, %arg1: i32) -> (i32, i32) {
    %c0_i32 = arith.constant 0 : i32
    %c0_i32_0 = arith.constant 0 : i32
    %c0_i32_1 = arith.constant 0 : i32
    return %c0_i32, %c0_i32_0 : i32, i32
  }
  func.func @transform_4(%arg0: i32, %arg1: i32) -> (i32, i32) {
    %c0_i32 = arith.constant 0 : i32
    %c0_i32_0 = arith.constant 0 : i32
    %c0_i32_1 = arith.constant 0 : i32
    return %c0_i32, %c0_i32_0 : i32, i32
  }
  func.func @transform_5(%arg0: i32, %arg1: i32) -> (i32, i32) {
    %c0_i32 = arith.constant 0 : i32
    %c0_i32_0 = arith.constant 0 : i32
    return %arg0, %c0_i32 : i32, i32
  }
}

</mosaic_0001>

<llo_original>
// kernel: encoder_forward.4
$region0: #{encoder_forward.4}
  #allocation0 [shape = 'u32[]', space=smem, size = 0x4, offset = 0x4, fixed_abs, tag = 'smem constant byte address 0x4 - core index']
  #allocation1 [shape = 'u32[144,128]{1,0:T(1,128)}', space=vmem, size = 0x12000, scoped, tag = 'internal scratch']
  #allocation2 [shape = 'f32[1,1]{1,0:T(1,128)S(6)}', space=smem, size = 0x200, scoped, tag = 'scoped memory for encoder_forward.4']
  %s0 = inlined_call_operand.vmem [shape: f32[14,128], index: 0, kind: input, shape index: {}]
  %s1 = inlined_call_operand.vmem [shape: f32[7,14], index: 1, kind: input, shape index: {}]
  %s2 = inlined_call_operand.vmem [shape: f32[7,1], index: 2, kind: input, shape index: {}]
  %s3 = inlined_call_operand.vmem [shape: f32[1,7], index: 3, kind: input, shape index: {}]
  %s4 = inlined_call_operand.<no memory space> [shape: f32[1,1], index: 4, kind: input, shape index: {}]
  %s5 = inlined_call_operand.vmem [shape: f32[1,128], index: 5, kind: output, shape index: {}]
  %s6 = sld [smem:[#allocation0]]
  $region30: #{encoder_forward.4} parent=0
    _
  %s8 = ssub.s32 1, %s6
  %s9 = scalar_select 0, %s8, %s6
  %10 = sst [smem:[#allocation2]] %s4
  // Predicated region
  $region2: #{encoder_forward.4} parent=0 // pred_check
    _
  $region3: #{encoder_forward.4} parent=0 // pred_check_branch
    %12 = sbr.rel (0) target = $region5
  $region4: #{encoder_forward.4} parent=0 // pred_region
    _
  $region5: #{encoder_forward.4} parent=0 // pred_fallthru
    _
  // Predicated region
  $region6: #{encoder_forward.4} parent=0 // pred_check
    _
  $region7: #{encoder_forward.4} parent=0 // pred_check_branch
    %14 = sbr.rel (0) target = $region9
  $region8: #{encoder_forward.4} parent=0 // pred_region
    _
  $region9: #{encoder_forward.4} parent=0 // pred_fallthru
    _
  // Predicated region
  $region10: #{encoder_forward.4} parent=0 // pred_check
    _
  $region11: #{encoder_forward.4} parent=0 // pred_check_branch
    %16 = sbr.rel (0) target = $region13
  $region12: #{encoder_forward.4} parent=0 // pred_region
    _
  $region13: #{encoder_forward.4} parent=0 // pred_fallthru
    _
  // Predicated region
  $region14: #{encoder_forward.4} parent=0 // pred_check
    _
  $region15: #{encoder_forward.4} parent=0 // pred_check_branch
    %18 = sbr.rel (0) target = $region17
  $region16: #{encoder_forward.4} parent=0 // pred_region
    _
  $region17: #{encoder_forward.4} parent=0 // pred_fallthru
    _
  // Predicated region
  $region18: #{encoder_forward.4} parent=0 // pred_check
    _
  $region19: #{encoder_forward.4} parent=0 // pred_check_branch
    %20 = sbr.rel (0) target = $region21
  $region20: #{encoder_forward.4} parent=0 // pred_region
    _
  $region21: #{encoder_forward.4} parent=0 // pred_fallthru
    _
  %v21 = vld [vmem:[%s0] sm:$0xff]
  %v22 = vld [vmem:[%s0 + $0x8] sm:$0x3f]
  %v23 = vld [vmem:[%s1] sm:$0x7f]
  %v24 = vld [vmem:[%s2] sm:$0x7f]
  %26 = vset.pattern.permute.xlu0 0
  %27 = vperm.xlu0 %26, %v24
  %v28 = vpop.permute.xlu0 %27
  %vm30 = vcmask 113664
  %v32 = vsel %vm30, %v23, 0
  %vm34 = vcmask 1045504
  %v36 = vsel %vm34, %v22, 0
  %38 = vmatprep.subr.mxu0 0.0
  %39 = vmatpush1.msra.mxu0 %v21
  %40 = vmatprep.subr.mxu0 0.0
  %41 = vmatpush1.msra.mxu0 %v36
  %42 = vmatprep.subr.mxu0 0.0
  %43 = vmatpush1.msra.mxu0 0.0
  %44 = vmatprep.subr.mxu0 0.0
  %45 = vmatpush1.msra.mxu0 0.0
  %46 = vmatprep.subr.mxu0 0.0
  %47 = vmatpush1.msra.mxu0 0.0
  %48 = vmatprep.subr.mxu0 0.0
  %49 = vmatpush1.msra.mxu0 0.0
  %50 = vmatprep.subr.mxu0 0.0
  %51 = vmatpush1.msra.mxu0 0.0
  %52 = vmatprep.subr.mxu0 0.0
  %53 = vmatpush1.msra.mxu0 0.0
  %54 = vmatprep.subr.mxu0 0.0
  %55 = vmatpush1.msra.mxu0 0.0
  %56 = vmatprep.subr.mxu0 0.0
  %57 = vmatpush1.msra.mxu0 0.0
  %58 = vmatprep.subr.mxu0 0.0
  %59 = vmatpush1.msra.mxu0 0.0
  %60 = vmatprep.subr.mxu0 0.0
  %61 = vmatpush1.msra.mxu0 0.0
  %62 = vmatprep.subr.mxu0 0.0
  %63 = vmatpush1.msra.mxu0 0.0
  %64 = vmatprep.subr.mxu0 0.0
  %65 = vmatpush1.msra.mxu0 0.0
  %66 = vmatprep.subr.mxu0 0.0
  %67 = vmatpush1.msra.mxu0 0.0
  %68 = vmatprep.subr.mxu0 0.0
  %69 = vmatpush1.msra.mxu0 0.0
  %70 = vmatprep.subr.mxu0 0.0
  %71 = vmatpush1.msra.mxu0 0.0
  %72 = vmatprep.subr.mxu0 0.0
  %73 = vmatpush1.msra.mxu0 0.0
  %74 = vmatprep.subr.mxu0 0.0
  %75 = vmatpush1.msra.mxu0 0.0
  %76 = vmatprep.subr.mxu0 0.0
  %77 = vmatpush1.msra.mxu0 0.0
  %78 = vmatprep.subr.mxu0 0.0
  %79 = vmatpush1.msra.mxu0 0.0
  %80 = vmatprep.subr.mxu0 0.0
  %81 = vmatpush1.msra.mxu0 0.0
  %82 = vmatprep.subr.mxu0 0.0
  %83 = vmatpush1.msra.mxu0 0.0
  %84 = vmatprep.subr.mxu0 0.0
  %85 = vmatpush1.msra.mxu0 0.0
  %86 = vmatprep.subr.mxu0 0.0
  %87 = vmatpush1.msra.mxu0 0.0
  %88 = vmatprep.subr.mxu0 0.0
  %89 = vmatpush1.msra.mxu0 0.0
  %90 = vmatprep.subr.mxu0 0.0
  %91 = vmatpush1.msra.mxu0 0.0
  %92 = vmatprep.subr.mxu0 0.0
  %93 = vmatpush1.msra.mxu0 0.0
  %94 = vmatprep.subr.mxu0 0.0
  %95 = vmatpush1.msra.mxu0 0.0
  %96 = vmatprep.subr.mxu0 0.0
  %97 = vmatpush1.msra.mxu0 0.0
  %98 = vmatprep.subr.mxu0 0.0
  %99 = vmatpush1.msra.mxu0 0.0
  %100 = vmatprep.subr.mxu0 0.0
  %101 = vmatpush1.msra.mxu0 0.0
  %102 = vmatprep.mubr.f32.mxu0 0.0
  %103 = vmatmul.mubr.f32.gmra.mrb[0].mxu0 %v32
  %v104 = vpop.f32.mrb[0].mxu0
  %v105 = vadd.f32 %v28, %v104
  %v106 = vpop.f32.mrb[0].mxu0
  %107 = vdwg.mxu0
  %v108 = vmax.f32 %v105, 0.0
  %v109 = vld [vmem:[%s3] sm:$0x1]
  %s110 = sld [smem:[#allocation2]]
  %v111 = vstv %s110
  %vm112 = vcmask 56320
  %v114 = vsel %vm112, %v109, 0
  %vm116 = vcmask 1046528
  %v118 = vsel %vm116, %v108, 0
  %120 = vmatprep.subr.mxu0 0.0
  %121 = vmatpush1.msra.mxu0 %v118
  %122 = vmatprep.subr.mxu0 0.0
  %123 = vmatpush1.msra.mxu0 0.0
  %124 = vmatprep.subr.mxu0 0.0
  %125 = vmatpush1.msra.mxu0 0.0
  %126 = vmatprep.subr.mxu0 0.0
  %127 = vmatpush1.msra.mxu0 0.0
  %128 = vmatprep.subr.mxu0 0.0
  %129 = vmatpush1.msra.mxu0 0.0
  %130 = vmatprep.subr.mxu0 0.0
  %131 = vmatpush1.msra.mxu0 0.0
  %132 = vmatprep.subr.mxu0 0.0
  %133 = vmatpush1.msra.mxu0 0.0
  %134 = vmatprep.subr.mxu0 0.0
  %135 = vmatpush1.msra.mxu0 0.0
  %136 = vmatprep.subr.mxu0 0.0
  %137 = vmatpush1.msra.mxu0 0.0
  %138 = vmatprep.subr.mxu0 0.0
  %139 = vmatpush1.msra.mxu0 0.0
  %140 = vmatprep.subr.mxu0 0.0
  %141 = vmatpush1.msra.mxu0 0.0
  %142 = vmatprep.subr.mxu0 0.0
  %143 = vmatpush1.msra.mxu0 0.0
  %144 = vmatprep.subr.mxu0 0.0
  %145 = vmatpush1.msra.mxu0 0.0
  %146 = vmatprep.subr.mxu0 0.0
  %147 = vmatpush1.msra.mxu0 0.0
  %148 = vmatprep.subr.mxu0 0.0
  %149 = vmatpush1.msra.mxu0 0.0
  %150 = vmatprep.subr.mxu0 0.0
  %151 = vmatpush1.msra.mxu0 0.0
  %152 = vmatprep.subr.mxu0 0.0
  %153 = vmatpush1.msra.mxu0 0.0
  %154 = vmatprep.subr.mxu0 0.0
  %155 = vmatpush1.msra.mxu0 0.0
  %156 = vmatprep.subr.mxu0 0.0
  %157 = vmatpush1.msra.mxu0 0.0
  %158 = vmatprep.subr.mxu0 0.0
  %159 = vmatpush1.msra.mxu0 0.0
  %160 = vmatprep.subr.mxu0 0.0
  %161 = vmatpush1.msra.mxu0 0.0
  %162 = vmatprep.subr.mxu0 0.0
  %163 = vmatpush1.msra.mxu0 0.0
  %164 = vmatprep.subr.mxu0 0.0
  %165 = vmatpush1.msra.mxu0 0.0
  %166 = vmatprep.subr.mxu0 0.0
  %167 = vmatpush1.msra.mxu0 0.0
  %168 = vmatprep.subr.mxu0 0.0
  %169 = vmatpush1.msra.mxu0 0.0
  %170 = vmatprep.subr.mxu0 0.0
  %171 = vmatpush1.msra.mxu0 0.0
  %172 = vmatprep.subr.mxu0 0.0
  %173 = vmatpush1.msra.mxu0 0.0
  %174 = vmatprep.subr.mxu0 0.0
  %175 = vmatpush1.msra.mxu0 0.0
  %176 = vmatprep.subr.mxu0 0.0
  %177 = vmatpush1.msra.mxu0 0.0
  %178 = vmatprep.subr.mxu0 0.0
  %179 = vmatpush1.msra.mxu0 0.0
  %180 = vmatprep.subr.mxu0 0.0
  %181 = vmatpush1.msra.mxu0 0.0
  %182 = vmatprep.subr.mxu0 0.0
  %183 = vmatpush1.msra.mxu0 0.0
  %184 = vmatprep.mubr.f32.mxu0 0.0
  %185 = vmatmul.mubr.f32.gmra.mrb[0].mxu0 %v114
  %v186 = vpop.f32.mrb[0].mxu0
  %v187 = vadd.f32 %v111, %v186
  %v188 = vpop.f32.mrb[0].mxu0
  %189 = vdwg.mxu0
  %v190 = vxor.u32 %v187, 2147483648
  %v191 = vmul.f32 %v190, 1.442695
  %v192 = vpow.pop %v191
  %v193 = vadd.f32 %v192, 1.0
  %v194 = vrcp.pop %v193
  %v195 = vmul.f32 1.0, %v194
  %v196 = vmul.f32 %v195, 1.000001
  %v197 = vadd.f32 %v196, -1e-06
  %198 = vst [vmem:[%s5] sm:$0x1] %v197
  // Predicated region
  $region22: #{encoder_forward.4} parent=0 // pred_check
    _
  $region23: #{encoder_forward.4} parent=0 // pred_check_branch
    %200 = sbr.rel (0) target = $region25
  $region24: #{encoder_forward.4} parent=0 // pred_region
    _
  $region25: #{encoder_forward.4} parent=0 // pred_fallthru
    _
  // Predicated region
  $region26: #{encoder_forward.4} parent=0 // pred_check
    _
  $region27: #{encoder_forward.4} parent=0 // pred_check_branch
    %202 = sbr.rel (0) target = $region29
  $region28: #{encoder_forward.4} parent=0 // pred_region
    _
  $region29: #{encoder_forward.4} parent=0 // pred_fallthru
    _

// kernel: encoder_forward.5
$region0: #{encoder_forward.5}
  #allocation0 [shape = 'u32[]', space=smem, size = 0x4, offset = 0x4, fixed_abs, tag = 'smem constant byte address 0x4 - core index']
  #allocation1 [shape = 'u32[144,128]{1,0:T(1,128)}', space=vmem, size = 0x12000, scoped, tag = 'internal scratch']
  #allocation2 [shape = 'f32[128,32]{1,0:T(8,128)}', space=vmem, size = 0x10000, scoped, tag = 'scratch operand']
  #allocation3 [shape = 'f32[1,1]{1,0:T(1,128)S(6)}', space=smem, size = 0x200, scoped, tag = 'scoped memory for encoder_forward.5']
  %s0 = inlined_call_operand.vmem [shape: bf16[128,128], index: 0, kind: input, shape index: {}]
  %s1 = inlined_call_operand.vmem [shape: bf16[128,32], index: 1, kind: input, shape index: {}]
  %s2 = inlined_call_operand.vmem [shape: f32[128,1], index: 2, kind: input, shape index: {}]
  %s3 = inlined_call_operand.vmem [shape: f32[1,32], index: 3, kind: input, shape index: {}]
  %s4 = inlined_call_operand.<no memory space> [shape: f32[1,1], index: 4, kind: input, shape index: {}]
  %s5 = inlined_call_operand.vmem [shape: f32[128,32], index: 5, kind: output, shape index: {}]
  %s6 = sld [smem:[#allocation0]]
  $region38: #{encoder_forward.5} parent=0
    _
  %s8 = ssub.s32 1, %s6
  %s9 = scalar_select 0, %s8, %s6
  %10 = sst [smem:[#allocation3]] %s4
  // Predicated region
  $region2: #{encoder_forward.5} parent=0 // pred_check
    _
  $region3: #{encoder_forward.5} parent=0 // pred_check_branch
    %12 = sbr.rel (0) target = $region5
  $region4: #{encoder_forward.5} parent=0 // pred_region
    _
  $region5: #{encoder_forward.5} parent=0 // pred_fallthru
    _
  // Predicated region
  $region6: #{encoder_forward.5} parent=0 // pred_check
    _
  $region7: #{encoder_forward.5} parent=0 // pred_check_branch
    %14 = sbr.rel (0) target = $region9
  $region8: #{encoder_forward.5} parent=0 // pred_region
    _
  $region9: #{encoder_forward.5} parent=0 // pred_fallthru
    _
  // Predicated region
  $region10: #{encoder_forward.5} parent=0 // pred_check
    _
  $region11: #{encoder_forward.5} parent=0 // pred_check_branch
    %16 = sbr.rel (0) target = $region13
  $region12: #{encoder_forward.5} parent=0 // pred_region
    _
  $region13: #{encoder_forward.5} parent=0 // pred_fallthru
    _
  // Predicated region
  $region14: #{encoder_forward.5} parent=0 // pred_check
    _
  $region15: #{encoder_forward.5} parent=0 // pred_check_branch
    %18 = sbr.rel (0) target = $region17
  $region16: #{encoder_forward.5} parent=0 // pred_region
    _
  $region17: #{encoder_forward.5} parent=0 // pred_fallthru
    _
  // Predicated region
  $region18: #{encoder_forward.5} parent=0 // pred_check
    _
  $region19: #{encoder_forward.5} parent=0 // pred_check_branch
    %20 = sbr.rel (0) target = $region21
  $region20: #{encoder_forward.5} parent=0 // pred_region
    _
  $region21: #{encoder_forward.5} parent=0 // pred_fallthru
    _
  %p22 = scmp.eq.s32.totalorder 0, 0
  // Predicated region
  $region22: #{encoder_forward.5} parent=0 // pred_check
    %p23 = pneg %p22
  $region23: #{encoder_forward.5} parent=0 // pred_check_branch
    %25 = sbr.rel (%p23) target = $region25
  $region24: #{encoder_forward.5} parent=0 // pred_region
    %vm26 = vcmask 261120
    %27 = vst.msk [vmem:[#allocation2] sm:$0xff] %vm26, 0.0
    %28 = vst.msk [vmem:[#allocation2 + $0x8] sm:$0xff] %vm26, 0.0
    %29 = vst.msk [vmem:[#allocation2 + $0x10] sm:$0xff] %vm26, 0.0
    %30 = vst.msk [vmem:[#allocation2 + $0x18] sm:$0xff] %vm26, 0.0
    %31 = vst.msk [vmem:[#allocation2 + $0x20] sm:$0xff] %vm26, 0.0
    %32 = vst.msk [vmem:[#allocation2 + $0x28] sm:$0xff] %vm26, 0.0
    %33 = vst.msk [vmem:[#allocation2 + $0x30] sm:$0xff] %vm26, 0.0
    %34 = vst.msk [vmem:[#allocation2 + $0x38] sm:$0xff] %vm26, 0.0
    %35 = vst.msk [vmem:[#allocation2 + $0x40] sm:$0xff] %vm26, 0.0
    %36 = vst.msk [vmem:[#allocation2 + $0x48] sm:$0xff] %vm26, 0.0
    %37 = vst.msk [vmem:[#allocation2 + $0x50] sm:$0xff] %vm26, 0.0
    %38 = vst.msk [vmem:[#allocation2 + $0x58] sm:$0xff] %vm26, 0.0
    %39 = vst.msk [vmem:[#allocation2 + $0x60] sm:$0xff] %vm26, 0.0
    %40 = vst.msk [vmem:[#allocation2 + $0x68] sm:$0xff] %vm26, 0.0
    %41 = vst.msk [vmem:[#allocation2 + $0x70] sm:$0xff] %vm26, 0.0
    %42 = vst.msk [vmem:[#allocation2 + $0x78] sm:$0xff] %vm26, 0.0
  $region25: #{encoder_forward.5} parent=0 // pred_fallthru
    _
  %v43 = vld [vmem:[#allocation2] sm:$0xff]
  %v44 = vld [vmem:[#allocation2 + $0x8] sm:$0xff]
  %v45 = vld [vmem:[#allocation2 + $0x10] sm:$0xff]
  %v46 = vld [vmem:[#allocation2 + $0x18] sm:$0xff]
  %v47 = vld [vmem:[#allocation2 + $0x20] sm:$0xff]
  %v48 = vld [vmem:[#allocation2 + $0x28] sm:$0xff]
  %v49 = vld [vmem:[#allocation2 + $0x30] sm:$0xff]
  %v50 = vld [vmem:[#allocation2 + $0x38] sm:$0xff]
  %v51 = vld [vmem:[#allocation2 + $0x40] sm:$0xff]
  %v52 = vld [vmem:[#allocation2 + $0x48] sm:$0xff]
  %v53 = vld [vmem:[#allocation2 + $0x50] sm:$0xff]
  %v54 = vld [vmem:[#allocation2 + $0x58] sm:$0xff]
  %v55 = vld [vmem:[#allocation2 + $0x60] sm:$0xff]
  %v56 = vld [vmem:[#allocation2 + $0x68] sm:$0xff]
  %v57 = vld [vmem:[#allocation2 + $0x70] sm:$0xff]
  %v58 = vld [vmem:[#allocation2 + $0x78] sm:$0xff]
  %v59 = vld [vmem:[%s0] sm:$0xf]
  %v60 = vld [vmem:[%s0 + $0x4] sm:$0xf]
  %v61 = vld [vmem:[%s0 + $0x8] sm:$0xf]
  %v62 = vld [vmem:[%s0 + $0xc] sm:$0xf]
  %v63 = vld [vmem:[%s0 + $0x10] sm:$0xf]
  %v64 = vld [vmem:[%s0 + $0x14] sm:$0xf]
  %v65 = vld [vmem:[%s0 + $0x18] sm:$0xf]
  %v66 = vld [vmem:[%s0 + $0x1c] sm:$0xf]
  %v67 = vld [vmem:[%s0 + $0x20] sm:$0xf]
  %v68 = vld [vmem:[%s0 + $0x24] sm:$0xf]
  %v69 = vld [vmem:[%s0 + $0x28] sm:$0xf]
  %v70 = vld [vmem:[%s0 + $0x2c] sm:$0xf]
  %v71 = vld [vmem:[%s0 + $0x30] sm:$0xf]
  %v72 = vld [vmem:[%s0 + $0x34] sm:$0xf]
  %v73 = vld [vmem:[%s0 + $0x38] sm:$0xf]
  %v74 = vld [vmem:[%s0 + $0x3c] sm:$0xf]
  %v75 = vld [vmem:[%s1] sm:$0xf]
  %v76 = vld [vmem:[%s1 + $0x4] sm:$0xf]
  %v77 = vld [vmem:[%s1 + $0x8] sm:$0xf]
  %v78 = vld [vmem:[%s1 + $0xc] sm:$0xf]
  %v79 = vld [vmem:[%s1 + $0x10] sm:$0xf]
  %v80 = vld [vmem:[%s1 + $0x14] sm:$0xf]
  %v81 = vld [vmem:[%s1 + $0x18] sm:$0xf]
  %v82 = vld [vmem:[%s1 + $0x1c] sm:$0xf]
  %v83 = vld [vmem:[%s1 + $0x20] sm:$0xf]
  %v84 = vld [vmem:[%s1 + $0x24] sm:$0xf]
  %v85 = vld [vmem:[%s1 + $0x28] sm:$0xf]
  %v86 = vld [vmem:[%s1 + $0x2c] sm:$0xf]
  %v87 = vld [vmem:[%s1 + $0x30] sm:$0xf]
  %v88 = vld [vmem:[%s1 + $0x34] sm:$0xf]
  %v89 = vld [vmem:[%s1 + $0x38] sm:$0xf]
  %v90 = vld [vmem:[%s1 + $0x3c] sm:$0xf]
  %v107 = vunpack.c.l.b16 %v59
  %v108 = vunpack.c.l.b16 %v60
  %v109 = vunpack.c.l.b16 %v61
  %v110 = vunpack.c.l.b16 %v62
  %v111 = vunpack.c.l.b16 %v63
  %v112 = vunpack.c.l.b16 %v64
  %v113 = vunpack.c.l.b16 %v65
  %v114 = vunpack.c.l.b16 %v66
  %v115 = vunpack.c.l.b16 %v67
  %v116 = vunpack.c.l.b16 %v68
  %v117 = vunpack.c.l.b16 %v69
  %v118 = vunpack.c.l.b16 %v70
  %v119 = vunpack.c.l.b16 %v71
  %v120 = vunpack.c.l.b16 %v72
  %v121 = vunpack.c.l.b16 %v73
  %v122 = vunpack.c.l.b16 %v74
  %v123 = vpack.c.b16 %v108, %v107
  %v124 = vpack.c.b16 %v110, %v109
  %v125 = vpack.c.b16 %v112, %v111
  %v126 = vpack.c.b16 %v114, %v113
  %v127 = vpack.c.b16 %v116, %v115
  %v128 = vpack.c.b16 %v118, %v117
  %v129 = vpack.c.b16 %v120, %v119
  %v130 = vpack.c.b16 %v122, %v121
  %v155 = vunpack.c.l.b16 %v75
  %v156 = vunpack.c.l.b16 %v76
  %v157 = vunpack.c.l.b16 %v77
  %v158 = vunpack.c.l.b16 %v78
  %v159 = vunpack.c.l.b16 %v79
  %v160 = vunpack.c.l.b16 %v80
  %v161 = vunpack.c.l.b16 %v81
  %v162 = vunpack.c.l.b16 %v82
  %v163 = vunpack.c.l.b16 %v83
  %v164 = vunpack.c.l.b16 %v84
  %v165 = vunpack.c.l.b16 %v85
  %v166 = vunpack.c.l.b16 %v86
  %v167 = vunpack.c.l.b16 %v87
  %v168 = vunpack.c.l.b16 %v88
  %v169 = vunpack.c.l.b16 %v89
  %v170 = vunpack.c.l.b16 %v90
  %v171 = vpack.c.b16 %v156, %v155
  %v172 = vpack.c.b16 %v158, %v157
  %v173 = vpack.c.b16 %v160, %v159
  %v174 = vpack.c.b16 %v162, %v161
  %v175 = vpack.c.b16 %v164, %v163
  %v176 = vpack.c.b16 %v166, %v165
  %v177 = vpack.c.b16 %v168, %v167
  %v178 = vpack.c.b16 %v170, %v169
  %187 = vmatprep.subr.bf16.mxu0 0
  %188 = vmatpush1.bf16.msra.mxu0 %v171
  %189 = vmatprep.subr.bf16.mxu0 0
  %190 = vmatpush1.bf16.msra.mxu0 %v172
  %191 = vmatprep.subr.bf16.mxu0 0
  %192 = vmatpush1.bf16.msra.mxu0 %v173
  %193 = vmatprep.subr.bf16.mxu0 0
  %194 = vmatpush1.bf16.msra.mxu0 %v174
  %195 = vmatprep.subr.bf16.mxu0 0
  %196 = vmatpush1.bf16.msra.mxu0 %v175
  %197 = vmatprep.subr.bf16.mxu0 0
  %198 = vmatpush1.bf16.msra.mxu0 %v176
  %199 = vmatprep.subr.bf16.mxu0 0
  %200 = vmatpush1.bf16.msra.mxu0 %v177
  %201 = vmatprep.subr.bf16.mxu0 0
  %202 = vmatpush1.bf16.msra.mxu0 %v178
  %203 = vmatprep.subr.bf16.mxu0 0
  %204 = vmatpush1.bf16.msra.mxu0 0
  %205 = vmatprep.subr.bf16.mxu0 0
  %206 = vmatpush1.bf16.msra.mxu0 0
  %207 = vmatprep.subr.bf16.mxu0 0
  %208 = vmatpush1.bf16.msra.mxu0 0
  %209 = vmatprep.subr.bf16.mxu0 0
  %210 = vmatpush1.bf16.msra.mxu0 0
  %211 = vmatprep.subr.bf16.mxu0 0
  %212 = vmatpush1.bf16.msra.mxu0 0
  %213 = vmatprep.subr.bf16.mxu0 0
  %214 = vmatpush1.bf16.msra.mxu0 0
  %215 = vmatprep.subr.bf16.mxu0 0
  %216 = vmatpush1.bf16.msra.mxu0 0
  %217 = vmatprep.subr.bf16.mxu0 0
  %218 = vmatpush1.bf16.msra.mxu0 0
  %219 = vmatprep.mubr.bf16.mxu0 0
  %220 = vmatmul.mubr.bf16.gmra.mrb[0].mxu0 %v123
  %v221 = vpop.f32.mrb[0].mxu0
  %v222 = vadd.f32 0.0, %v221
  %v223 = vpop.f32.mrb[0].mxu0
  %v224 = vpop.f32.mrb[0].mxu0
  %v225 = vadd.f32 0.0, %v224
  %v226 = vpop.f32.mrb[0].mxu0
  %227 = vmatprep.mubr.bf16.mxu0 0
  %228 = vmatmul.mubr.bf16.gmra.mrb[0].mxu0 %v124
  %v229 = vpop.f32.mrb[0].mxu0
  %v230 = vadd.f32 0.0, %v229
  %v231 = vpop.f32.mrb[0].mxu0
  %v232 = vpop.f32.mrb[0].mxu0
  %v233 = vadd.f32 0.0, %v232
  %v234 = vpop.f32.mrb[0].mxu0
  %235 = vmatprep.mubr.bf16.mxu0 0
  %236 = vmatmul.mubr.bf16.gmra.mrb[0].mxu0 %v125
  %v237 = vpop.f32.mrb[0].mxu0
  %v238 = vadd.f32 0.0, %v237
  %v239 = vpop.f32.mrb[0].mxu0
  %v240 = vpop.f32.mrb[0].mxu0
  %v241 = vadd.f32 0.0, %v240
  %v242 = vpop.f32.mrb[0].mxu0
  %243 = vmatprep.mubr.bf16.mxu0 0
  %244 = vmatmul.mubr.bf16.gmra.mrb[0].mxu0 %v126
  %v245 = vpop.f32.mrb[0].mxu0
  %v246 = vadd.f32 0.0, %v245
  %v247 = vpop.f32.mrb[0].mxu0
  %v248 = vpop.f32.mrb[0].mxu0
  %v249 = vadd.f32 0.0, %v248
  %v250 = vpop.f32.mrb[0].mxu0
  %251 = vmatprep.mubr.bf16.mxu0 0
  %252 = vmatmul.mubr.bf16.gmra.mrb[0].mxu0 %v127
  %v253 = vpop.f32.mrb[0].mxu0
  %v254 = vadd.f32 0.0, %v253
  %v255 = vpop.f32.mrb[0].mxu0
  %v256 = vpop.f32.mrb[0].mxu0
  %v257 = vadd.f32 0.0, %v256
  %v258 = vpop.f32.mrb[0].mxu0
  %259 = vmatprep.mubr.bf16.mxu0 0
  %260 = vmatmul.mubr.bf16.gmra.mrb[0].mxu0 %v128
  %v261 = vpop.f32.mrb[0].mxu0
  %v262 = vadd.f32 0.0, %v261
  %v263 = vpop.f32.mrb[0].mxu0
  %v264 = vpop.f32.mrb[0].mxu0
  %v265 = vadd.f32 0.0, %v264
  %v266 = vpop.f32.mrb[0].mxu0
  %267 = vmatprep.mubr.bf16.mxu0 0
  %268 = vmatmul.mubr.bf16.gmra.mrb[0].mxu0 %v129
  %v269 = vpop.f32.mrb[0].mxu0
  %v270 = vadd.f32 0.0, %v269
  %v271 = vpop.f32.mrb[0].mxu0
  %v272 = vpop.f32.mrb[0].mxu0
  %v273 = vadd.f32 0.0, %v272
  %v274 = vpop.f32.mrb[0].mxu0
  %275 = vmatprep.mubr.bf16.mxu0 0
  %276 = vmatmul.mubr.bf16.gmra.mrb[0].mxu0 %v130
  %v277 = vpop.f32.mrb[0].mxu0
  %v278 = vadd.f32 0.0, %v277
  %v279 = vpop.f32.mrb[0].mxu0
  %v280 = vpop.f32.mrb[0].mxu0
  %v281 = vadd.f32 0.0, %v280
  %v282 = vpop.f32.mrb[0].mxu0
  %283 = vdwg.mxu0
  %v284 = vadd.f32 %v43, %v222
  %v285 = vadd.f32 %v44, %v225
  %v286 = vadd.f32 %v45, %v230
  %v287 = vadd.f32 %v46, %v233
  %v288 = vadd.f32 %v47, %v238
  %v289 = vadd.f32 %v48, %v241
  %v290 = vadd.f32 %v49, %v246
  %v291 = vadd.f32 %v50, %v249
  %v292 = vadd.f32 %v51, %v254
  %v293 = vadd.f32 %v52, %v257
  %v294 = vadd.f32 %v53, %v262
  %v295 = vadd.f32 %v54, %v265
  %v296 = vadd.f32 %v55, %v270
  %v297 = vadd.f32 %v56, %v273
  %v298 = vadd.f32 %v57, %v278
  %v299 = vadd.f32 %v58, %v281
  %vm300 = vcmask 261120
  %301 = vst.msk [vmem:[#allocation2] sm:$0xff] %vm300, %v284
  %302 = vst.msk [vmem:[#allocation2 + $0x8] sm:$0xff] %vm300, %v285
  %303 = vst.msk [vmem:[#allocation2 + $0x10] sm:$0xff] %vm300, %v286
  %304 = vst.msk [vmem:[#allocation2 + $0x18] sm:$0xff] %vm300, %v287
  %305 = vst.msk [vmem:[#allocation2 + $0x20] sm:$0xff] %vm300, %v288
  %306 = vst.msk [vmem:[#allocation2 + $0x28] sm:$0xff] %vm300, %v289
  %307 = vst.msk [vmem:[#allocation2 + $0x30] sm:$0xff] %vm300, %v290
  %308 = vst.msk [vmem:[#allocation2 + $0x38] sm:$0xff] %vm300, %v291
  %309 = vst.msk [vmem:[#allocation2 + $0x40] sm:$0xff] %vm300, %v292
  %310 = vst.msk [vmem:[#allocation2 + $0x48] sm:$0xff] %vm300, %v293
  %311 = vst.msk [vmem:[#allocation2 + $0x50] sm:$0xff] %vm300, %v294
  %312 = vst.msk [vmem:[#allocation2 + $0x58] sm:$0xff] %vm300, %v295
  %313 = vst.msk [vmem:[#allocation2 + $0x60] sm:$0xff] %vm300, %v296
  %314 = vst.msk [vmem:[#allocation2 + $0x68] sm:$0xff] %vm300, %v297
  %315 = vst.msk [vmem:[#allocation2 + $0x70] sm:$0xff] %vm300, %v298
  %316 = vst.msk [vmem:[#allocation2 + $0x78] sm:$0xff] %vm300, %v299
  // Predicated region
  $region26: #{encoder_forward.5} parent=0 // pred_check
    %p317 = pneg %p22
  $region27: #{encoder_forward.5} parent=0 // pred_check_branch
    %319 = sbr.rel (%p317) target = $region29
  $region28: #{encoder_forward.5} parent=0 // pred_region
    %v320 = vld [vmem:[#allocation2] sm:$0xff]
    %v321 = vld [vmem:[#allocation2 + $0x8] sm:$0xff]
    %v322 = vld [vmem:[#allocation2 + $0x10] sm:$0xff]
    %v323 = vld [vmem:[#allocation2 + $0x18] sm:$0xff]
    %v324 = vld [vmem:[#allocation2 + $0x20] sm:$0xff]
    %v325 = vld [vmem:[#allocation2 + $0x28] sm:$0xff]
    %v326 = vld [vmem:[#allocation2 + $0x30] sm:$0xff]
    %v327 = vld [vmem:[#allocation2 + $0x38] sm:$0xff]
    %v328 = vld [vmem:[#allocation2 + $0x40] sm:$0xff]
    %v329 = vld [vmem:[#allocation2 + $0x48] sm:$0xff]
    %v330 = vld [vmem:[#allocation2 + $0x50] sm:$0xff]
    %v331 = vld [vmem:[#allocation2 + $0x58] sm:$0xff]
    %v332 = vld [vmem:[#allocation2 + $0x60] sm:$0xff]
    %v333 = vld [vmem:[#allocation2 + $0x68] sm:$0xff]
    %v334 = vld [vmem:[#allocation2 + $0x70] sm:$0xff]
    %v335 = vld [vmem:[#allocation2 + $0x78] sm:$0xff]
    %v336 = vld [vmem:[%s2] sm:$0xff]
    %v337 = vld [vmem:[%s2 + $0x8] sm:$0xff]
    %v338 = vld [vmem:[%s2 + $0x10] sm:$0xff]
    %v339 = vld [vmem:[%s2 + $0x18] sm:$0xff]
    %v340 = vld [vmem:[%s2 + $0x20] sm:$0xff]
    %v341 = vld [vmem:[%s2 + $0x28] sm:$0xff]
    %v342 = vld [vmem:[%s2 + $0x30] sm:$0xff]
    %v343 = vld [vmem:[%s2 + $0x38] sm:$0xff]
    %v344 = vld [vmem:[%s2 + $0x40] sm:$0xff]
    %v345 = vld [vmem:[%s2 + $0x48] sm:$0xff]
    %v346 = vld [vmem:[%s2 + $0x50] sm:$0xff]
    %v347 = vld [vmem:[%s2 + $0x58] sm:$0xff]
    %v348 = vld [vmem:[%s2 + $0x60] sm:$0xff]
    %v349 = vld [vmem:[%s2 + $0x68] sm:$0xff]
    %v350 = vld [vmem:[%s2 + $0x70] sm:$0xff]
    %v351 = vld [vmem:[%s2 + $0x78] sm:$0xff]
    %353 = vset.pattern.permute.xlu0 0
    %354 = vperm.xlu0 %353, %v336
    %v355 = vpop.permute.xlu0 %354
    %358 = vset.pattern.permute.xlu0 0
    %359 = vperm.xlu0 %358, %v337
    %v360 = vpop.permute.xlu0 %359
    %363 = vset.pattern.permute.xlu0 0
    %364 = vperm.xlu0 %363, %v338
    %v365 = vpop.permute.xlu0 %364
    %368 = vset.pattern.permute.xlu0 0
    %369 = vperm.xlu0 %368, %v339
    %v370 = vpop.permute.xlu0 %369
    %373 = vset.pattern.permute.xlu0 0
    %374 = vperm.xlu0 %373, %v340
    %v375 = vpop.permute.xlu0 %374
    %378 = vset.pattern.permute.xlu0 0
    %379 = vperm.xlu0 %378, %v341
    %v380 = vpop.permute.xlu0 %379
    %383 = vset.pattern.permute.xlu0 0
    %384 = vperm.xlu0 %383, %v342
    %v385 = vpop.permute.xlu0 %384
    %388 = vset.pattern.permute.xlu0 0
    %389 = vperm.xlu0 %388, %v343
    %v390 = vpop.permute.xlu0 %389
    %393 = vset.pattern.permute.xlu0 0
    %394 = vperm.xlu0 %393, %v344
    %v395 = vpop.permute.xlu0 %394
    %398 = vset.pattern.permute.xlu0 0
    %399 = vperm.xlu0 %398, %v345
    %v400 = vpop.permute.xlu0 %399
    %403 = vset.pattern.permute.xlu0 0
    %404 = vperm.xlu0 %403, %v346
    %v405 = vpop.permute.xlu0 %404
    %408 = vset.pattern.permute.xlu0 0
    %409 = vperm.xlu0 %408, %v347
    %v410 = vpop.permute.xlu0 %409
    %413 = vset.pattern.permute.xlu0 0
    %414 = vperm.xlu0 %413, %v348
    %v415 = vpop.permute.xlu0 %414
    %418 = vset.pattern.permute.xlu0 0
    %419 = vperm.xlu0 %418, %v349
    %v420 = vpop.permute.xlu0 %419
    %423 = vset.pattern.permute.xlu0 0
    %424 = vperm.xlu0 %423, %v350
    %v425 = vpop.permute.xlu0 %424
    %428 = vset.pattern.permute.xlu0 0
    %429 = vperm.xlu0 %428, %v351
    %v430 = vpop.permute.xlu0 %429
    %v432 = vmul.f32 %v320, %v355
    %v433 = vmul.f32 %v321, %v360
    %v434 = vmul.f32 %v322, %v365
    %v435 = vmul.f32 %v323, %v370
    %v436 = vmul.f32 %v324, %v375
    %v437 = vmul.f32 %v325, %v380
    %v438 = vmul.f32 %v326, %v385
    %v439 = vmul.f32 %v327, %v390
    %v440 = vmul.f32 %v328, %v395
    %v441 = vmul.f32 %v329, %v400
    %v442 = vmul.f32 %v330, %v405
    %v443 = vmul.f32 %v331, %v410
    %v444 = vmul.f32 %v332, %v415
    %v445 = vmul.f32 %v333, %v420
    %v446 = vmul.f32 %v334, %v425
    %v447 = vmul.f32 %v335, %v430
    %v448 = vld [vmem:[%s3] sm:$0x1]
    %v450 = vlaneseq
    %v451 = vshrl.u32 %v450, 7
    %v452 = vsub.s32 0, %v451
    %v453 = vrot.slane %v448, %v452
    %v455 = vadd.f32 %v432, %v453
    %v456 = vadd.f32 %v433, %v453
    %v457 = vadd.f32 %v434, %v453
    %v458 = vadd.f32 %v435, %v453
    %v459 = vadd.f32 %v436, %v453
    %v460 = vadd.f32 %v437, %v453
    %v461 = vadd.f32 %v438, %v453
    %v462 = vadd.f32 %v439, %v453
    %v463 = vadd.f32 %v440, %v453
    %v464 = vadd.f32 %v441, %v453
    %v465 = vadd.f32 %v442, %v453
    %v466 = vadd.f32 %v443, %v453
    %v467 = vadd.f32 %v444, %v453
    %v468 = vadd.f32 %v445, %v453
    %v469 = vadd.f32 %v446, %v453
    %v470 = vadd.f32 %v447, %v453
    %s471 = sld [smem:[#allocation3]]
    %vm472 = vcmp.gt.f32.partialorder %v455, 0.0
    %vm473 = vcmp.gt.f32.partialorder %v456, 0.0
    %vm474 = vcmp.gt.f32.partialorder %v457, 0.0
    %vm475 = vcmp.gt.f32.partialorder %v458, 0.0
    %vm476 = vcmp.gt.f32.partialorder %v459, 0.0
    %vm477 = vcmp.gt.f32.partialorder %v460, 0.0
    %vm478 = vcmp.gt.f32.partialorder %v461, 0.0
    %vm479 = vcmp.gt.f32.partialorder %v462, 0.0
    %vm480 = vcmp.gt.f32.partialorder %v463, 0.0
    %vm481 = vcmp.gt.f32.partialorder %v464, 0.0
    %vm482 = vcmp.gt.f32.partialorder %v465, 0.0
    %vm483 = vcmp.gt.f32.partialorder %v466, 0.0
    %vm484 = vcmp.gt.f32.partialorder %v467, 0.0
    %vm485 = vcmp.gt.f32.partialorder %v468, 0.0
    %vm486 = vcmp.gt.f32.partialorder %v469, 0.0
    %vm487 = vcmp.gt.f32.partialorder %v470, 0.0
    %v488 = vstv %s471
    %v489 = vmul.f32 %v488, %v455
    %v490 = vmul.f32 %v488, %v456
    %v491 = vmul.f32 %v488, %v457
    %v492 = vmul.f32 %v488, %v458
    %v493 = vmul.f32 %v488, %v459
    %v494 = vmul.f32 %v488, %v460
    %v495 = vmul.f32 %v488, %v461
    %v496 = vmul.f32 %v488, %v462
    %v497 = vmul.f32 %v488, %v463
    %v498 = vmul.f32 %v488, %v464
    %v499 = vmul.f32 %v488, %v465
    %v500 = vmul.f32 %v488, %v466
    %v501 = vmul.f32 %v488, %v467
    %v502 = vmul.f32 %v488, %v468
    %v503 = vmul.f32 %v488, %v469
    %v504 = vmul.f32 %v488, %v470
    %v505 = vsel %vm472, %v455, %v489
    %v506 = vsel %vm473, %v456, %v490
    %v507 = vsel %vm474, %v457, %v491
    %v508 = vsel %vm475, %v458, %v492
    %v509 = vsel %vm476, %v459, %v493
    %v510 = vsel %vm477, %v460, %v494
    %v511 = vsel %vm478, %v461, %v495
    %v512 = vsel %vm479, %v462, %v496
    %v513 = vsel %vm480, %v463, %v497
    %v514 = vsel %vm481, %v464, %v498
    %v515 = vsel %vm482, %v465, %v499
    %v516 = vsel %vm483, %v466, %v500
    %v517 = vsel %vm484, %v467, %v501
    %v518 = vsel %vm485, %v468, %v502
    %v519 = vsel %vm486, %v469, %v503
    %v520 = vsel %vm487, %v470, %v504
    %521 = vst.msk [vmem:[%s5] sm:$0xff] %vm300, %v505
    %522 = vst.msk [vmem:[%s5 + $0x8] sm:$0xff] %vm300, %v506
    %523 = vst.msk [vmem:[%s5 + $0x10] sm:$0xff] %vm300, %v507
    %524 = vst.msk [vmem:[%s5 + $0x18] sm:$0xff] %vm300, %v508
    %525 = vst.msk [vmem:[%s5 + $0x20] sm:$0xff] %vm300, %v509
    %526 = vst.msk [vmem:[%s5 + $0x28] sm:$0xff] %vm300, %v510
    %527 = vst.msk [vmem:[%s5 + $0x30] sm:$0xff] %vm300, %v511
    %528 = vst.msk [vmem:[%s5 + $0x38] sm:$0xff] %vm300, %v512
    %529 = vst.msk [vmem:[%s5 + $0x40] sm:$0xff] %vm300, %v513
    %530 = vst.msk [vmem:[%s5 + $0x48] sm:$0xff] %vm300, %v514
    %531 = vst.msk [vmem:[%s5 + $0x50] sm:$0xff] %vm300, %v515
    %532 = vst.msk [vmem:[%s5 + $0x58] sm:$0xff] %vm300, %v516
    %533 = vst.msk [vmem:[%s5 + $0x60] sm:$0xff] %vm300, %v517
    %534 = vst.msk [vmem:[%s5 + $0x68] sm:$0xff] %vm300, %v518
    %535 = vst.msk [vmem:[%s5 + $0x70] sm:$0xff] %vm300, %v519
    %536 = vst.msk [vmem:[%s5 + $0x78] sm:$0xff] %vm300, %v520
  $region29: #{encoder_forward.5} parent=0 // pred_fallthru
    _
  // Predicated region
  $region30: #{encoder_forward.5} parent=0 // pred_check
    _
  $region31: #{encoder_forward.5} parent=0 // pred_check_branch
    %538 = sbr.rel (0) target = $region33
  $region32: #{encoder_forward.5} parent=0 // pred_region
    _
  $region33: #{encoder_forward.5} parent=0 // pred_fallthru
    _
  // Predicated region
  $region34: #{encoder_forward.5} parent=0 // pred_check
    _
  $region35: #{encoder_forward.5} parent=0 // pred_check_branch
    %540 = sbr.rel (0) target = $region37
  $region36: #{encoder_forward.5} parent=0 // pred_region
    _
  $region37: #{encoder_forward.5} parent=0 // pred_fallthru
    _

// kernel: encoder_forward.7
$region0: #{encoder_forward.7}
  #allocation0 [shape = 'u32[]', space=smem, size = 0x4, offset = 0x4, fixed_abs, tag = 'smem constant byte address 0x4 - core index']
  #allocation1 [shape = 'u32[144,128]{1,0:T(1,128)}', space=vmem, size = 0x12000, scoped, tag = 'internal scratch']
  #allocation2 [shape = 'f32[128,16]{1,0:T(8,128)}', space=vmem, size = 0x10000, scoped, tag = 'scratch operand']
  #allocation3 [shape = 'f32[1,1]{1,0:T(1,128)S(6)}', space=smem, size = 0x200, scoped, tag = 'scoped memory for encoder_forward.7']
  %s0 = inlined_call_operand.vmem [shape: bf16[128,128], index: 0, kind: input, shape index: {}]
  %s1 = inlined_call_operand.vmem [shape: bf16[128,16], index: 1, kind: input, shape index: {}]
  %s2 = inlined_call_operand.vmem [shape: f32[128,1], index: 2, kind: input, shape index: {}]
  %s3 = inlined_call_operand.vmem [shape: f32[1,16], index: 3, kind: input, shape index: {}]
  %s4 = inlined_call_operand.<no memory space> [shape: f32[1,1], index: 4, kind: input, shape index: {}]
  %s5 = inlined_call_operand.vmem [shape: f32[128,16], index: 5, kind: output, shape index: {}]
  %s6 = sld [smem:[#allocation0]]
  $region38: #{encoder_forward.7} parent=0
    _
  %s8 = ssub.s32 1, %s6
  %s9 = scalar_select 0, %s8, %s6
  %10 = sst [smem:[#allocation3]] %s4
  // Predicated region
  $region2: #{encoder_forward.7} parent=0 // pred_check
    _
  $region3: #{encoder_forward.7} parent=0 // pred_check_branch
    %12 = sbr.rel (0) target = $region5
  $region4: #{encoder_forward.7} parent=0 // pred_region
    _
  $region5: #{encoder_forward.7} parent=0 // pred_fallthru
    _
  // Predicated region
  $region6: #{encoder_forward.7} parent=0 // pred_check
    _
  $region7: #{encoder_forward.7} parent=0 // pred_check_branch
    %14 = sbr.rel (0) target = $region9
  $region8: #{encoder_forward.7} parent=0 // pred_region
    _
  $region9: #{encoder_forward.7} parent=0 // pred_fallthru
    _
  // Predicated region
  $region10: #{encoder_forward.7} parent=0 // pred_check
    _
  $region11: #{encoder_forward.7} parent=0 // pred_check_branch
    %16 = sbr.rel (0) target = $region13
  $region12: #{encoder_forward.7} parent=0 // pred_region
    _
  $region13: #{encoder_forward.7} parent=0 // pred_fallthru
    _
  // Predicated region
  $region14: #{encoder_forward.7} parent=0 // pred_check
    _
  $region15: #{encoder_forward.7} parent=0 // pred_check_branch
    %18 = sbr.rel (0) target = $region17
  $region16: #{encoder_forward.7} parent=0 // pred_region
    _
  $region17: #{encoder_forward.7} parent=0 // pred_fallthru
    _
  // Predicated region
  $region18: #{encoder_forward.7} parent=0 // pred_check
    _
  $region19: #{encoder_forward.7} parent=0 // pred_check_branch
    %20 = sbr.rel (0) target = $region21
  $region20: #{encoder_forward.7} parent=0 // pred_region
    _
  $region21: #{encoder_forward.7} parent=0 // pred_fallthru
    _
  %p22 = scmp.eq.s32.totalorder 0, 0
  // Predicated region
  $region22: #{encoder_forward.7} parent=0 // pred_check
    %p23 = pneg %p22
  $region23: #{encoder_forward.7} parent=0 // pred_check_branch
    %25 = sbr.rel (%p23) target = $region25
  $region24: #{encoder_forward.7} parent=0 // pred_region
    %vm26 = vcmask 130048
    %27 = vst.msk [vmem:[#allocation2] sm:$0xff] %vm26, 0.0
    %28 = vst.msk [vmem:[#allocation2 + $0x8] sm:$0xff] %vm26, 0.0
    %29 = vst.msk [vmem:[#allocation2 + $0x10] sm:$0xff] %vm26, 0.0
    %30 = vst.msk [vmem:[#allocation2 + $0x18] sm:$0xff] %vm26, 0.0
    %31 = vst.msk [vmem:[#allocation2 + $0x20] sm:$0xff] %vm26, 0.0
    %32 = vst.msk [vmem:[#allocation2 + $0x28] sm:$0xff] %vm26, 0.0
    %33 = vst.msk [vmem:[#allocation2 + $0x30] sm:$0xff] %vm26, 0.0
    %34 = vst.msk [vmem:[#allocation2 + $0x38] sm:$0xff] %vm26, 0.0
    %35 = vst.msk [vmem:[#allocation2 + $0x40] sm:$0xff] %vm26, 0.0
    %36 = vst.msk [vmem:[#allocation2 + $0x48] sm:$0xff] %vm26, 0.0
    %37 = vst.msk [vmem:[#allocation2 + $0x50] sm:$0xff] %vm26, 0.0
    %38 = vst.msk [vmem:[#allocation2 + $0x58] sm:$0xff] %vm26, 0.0
    %39 = vst.msk [vmem:[#allocation2 + $0x60] sm:$0xff] %vm26, 0.0
    %40 = vst.msk [vmem:[#allocation2 + $0x68] sm:$0xff] %vm26, 0.0
    %41 = vst.msk [vmem:[#allocation2 + $0x70] sm:$0xff] %vm26, 0.0
    %42 = vst.msk [vmem:[#allocation2 + $0x78] sm:$0xff] %vm26, 0.0
  $region25: #{encoder_forward.7} parent=0 // pred_fallthru
    _
  %v43 = vld [vmem:[#allocation2] sm:$0xff]
  %v44 = vld [vmem:[#allocation2 + $0x8] sm:$0xff]
  %v45 = vld [vmem:[#allocation2 + $0x10] sm:$0xff]
  %v46 = vld [vmem:[#allocation2 + $0x18] sm:$0xff]
  %v47 = vld [vmem:[#allocation2 + $0x20] sm:$0xff]
  %v48 = vld [vmem:[#allocation2 + $0x28] sm:$0xff]
  %v49 = vld [vmem:[#allocation2 + $0x30] sm:$0xff]
  %v50 = vld [vmem:[#allocation2 + $0x38] sm:$0xff]
  %v51 = vld [vmem:[#allocation2 + $0x40] sm:$0xff]
  %v52 = vld [vmem:[#allocation2 + $0x48] sm:$0xff]
  %v53 = vld [vmem:[#allocation2 + $0x50] sm:$0xff]
  %v54 = vld [vmem:[#allocation2 + $0x58] sm:$0xff]
  %v55 = vld [vmem:[#allocation2 + $0x60] sm:$0xff]
  %v56 = vld [vmem:[#allocation2 + $0x68] sm:$0xff]
  %v57 = vld [vmem:[#allocation2 + $0x70] sm:$0xff]
  %v58 = vld [vmem:[#allocation2 + $0x78] sm:$0xff]
  %v59 = vld [vmem:[%s0] sm:$0xf]
  %v60 = vld [vmem:[%s0 + $0x4] sm:$0xf]
  %v61 = vld [vmem:[%s0 + $0x8] sm:$0xf]
  %v62 = vld [vmem:[%s0 + $0xc] sm:$0xf]
  %v63 = vld [vmem:[%s0 + $0x10] sm:$0xf]
  %v64 = vld [vmem:[%s0 + $0x14] sm:$0xf]
  %v65 = vld [vmem:[%s0 + $0x18] sm:$0xf]
  %v66 = vld [vmem:[%s0 + $0x1c] sm:$0xf]
  %v67 = vld [vmem:[%s0 + $0x20] sm:$0xf]
  %v68 = vld [vmem:[%s0 + $0x24] sm:$0xf]
  %v69 = vld [vmem:[%s0 + $0x28] sm:$0xf]
  %v70 = vld [vmem:[%s0 + $0x2c] sm:$0xf]
  %v71 = vld [vmem:[%s0 + $0x30] sm:$0xf]
  %v72 = vld [vmem:[%s0 + $0x34] sm:$0xf]
  %v73 = vld [vmem:[%s0 + $0x38] sm:$0xf]
  %v74 = vld [vmem:[%s0 + $0x3c] sm:$0xf]
  %v75 = vld [vmem:[%s1] sm:$0xf]
  %v76 = vld [vmem:[%s1 + $0x4] sm:$0xf]
  %v77 = vld [vmem:[%s1 + $0x8] sm:$0xf]
  %v78 = vld [vmem:[%s1 + $0xc] sm:$0xf]
  %v79 = vld [vmem:[%s1 + $0x10] sm:$0xf]
  %v80 = vld [vmem:[%s1 + $0x14] sm:$0xf]
  %v81 = vld [vmem:[%s1 + $0x18] sm:$0xf]
  %v82 = vld [vmem:[%s1 + $0x1c] sm:$0xf]
  %v83 = vld [vmem:[%s1 + $0x20] sm:$0xf]
  %v84 = vld [vmem:[%s1 + $0x24] sm:$0xf]
  %v85 = vld [vmem:[%s1 + $0x28] sm:$0xf]
  %v86 = vld [vmem:[%s1 + $0x2c] sm:$0xf]
  %v87 = vld [vmem:[%s1 + $0x30] sm:$0xf]
  %v88 = vld [vmem:[%s1 + $0x34] sm:$0xf]
  %v89 = vld [vmem:[%s1 + $0x38] sm:$0xf]
  %v90 = vld [vmem:[%s1 + $0x3c] sm:$0xf]
  %v107 = vunpack.c.l.b16 %v59
  %v108 = vunpack.c.l.b16 %v60
  %v109 = vunpack.c.l.b16 %v61
  %v110 = vunpack.c.l.b16 %v62
  %v111 = vunpack.c.l.b16 %v63
  %v112 = vunpack.c.l.b16 %v64
  %v113 = vunpack.c.l.b16 %v65
  %v114 = vunpack.c.l.b16 %v66
  %v115 = vunpack.c.l.b16 %v67
  %v116 = vunpack.c.l.b16 %v68
  %v117 = vunpack.c.l.b16 %v69
  %v118 = vunpack.c.l.b16 %v70
  %v119 = vunpack.c.l.b16 %v71
  %v120 = vunpack.c.l.b16 %v72
  %v121 = vunpack.c.l.b16 %v73
  %v122 = vunpack.c.l.b16 %v74
  %v123 = vpack.c.b16 %v108, %v107
  %v124 = vpack.c.b16 %v110, %v109
  %v125 = vpack.c.b16 %v112, %v111
  %v126 = vpack.c.b16 %v114, %v113
  %v127 = vpack.c.b16 %v116, %v115
  %v128 = vpack.c.b16 %v118, %v117
  %v129 = vpack.c.b16 %v120, %v119
  %v130 = vpack.c.b16 %v122, %v121
  %v155 = vunpack.c.l.b16 %v75
  %v156 = vunpack.c.l.b16 %v76
  %v157 = vunpack.c.l.b16 %v77
  %v158 = vunpack.c.l.b16 %v78
  %v159 = vunpack.c.l.b16 %v79
  %v160 = vunpack.c.l.b16 %v80
  %v161 = vunpack.c.l.b16 %v81
  %v162 = vunpack.c.l.b16 %v82
  %v163 = vunpack.c.l.b16 %v83
  %v164 = vunpack.c.l.b16 %v84
  %v165 = vunpack.c.l.b16 %v85
  %v166 = vunpack.c.l.b16 %v86
  %v167 = vunpack.c.l.b16 %v87
  %v168 = vunpack.c.l.b16 %v88
  %v169 = vunpack.c.l.b16 %v89
  %v170 = vunpack.c.l.b16 %v90
  %v171 = vpack.c.b16 %v156, %v155
  %v172 = vpack.c.b16 %v158, %v157
  %v173 = vpack.c.b16 %v160, %v159
  %v174 = vpack.c.b16 %v162, %v161
  %v175 = vpack.c.b16 %v164, %v163
  %v176 = vpack.c.b16 %v166, %v165
  %v177 = vpack.c.b16 %v168, %v167
  %v178 = vpack.c.b16 %v170, %v169
  %187 = vmatprep.subr.bf16.mxu0 0
  %188 = vmatpush1.bf16.msra.mxu0 %v171
  %189 = vmatprep.subr.bf16.mxu0 0
  %190 = vmatpush1.bf16.msra.mxu0 %v172
  %191 = vmatprep.subr.bf16.mxu0 0
  %192 = vmatpush1.bf16.msra.mxu0 %v173
  %193 = vmatprep.subr.bf16.mxu0 0
  %194 = vmatpush1.bf16.msra.mxu0 %v174
  %195 = vmatprep.subr.bf16.mxu0 0
  %196 = vmatpush1.bf16.msra.mxu0 %v175
  %197 = vmatprep.subr.bf16.mxu0 0
  %198 = vmatpush1.bf16.msra.mxu0 %v176
  %199 = vmatprep.subr.bf16.mxu0 0
  %200 = vmatpush1.bf16.msra.mxu0 %v177
  %201 = vmatprep.subr.bf16.mxu0 0
  %202 = vmatpush1.bf16.msra.mxu0 %v178
  %203 = vmatprep.subr.bf16.mxu0 0
  %204 = vmatpush1.bf16.msra.mxu0 0
  %205 = vmatprep.subr.bf16.mxu0 0
  %206 = vmatpush1.bf16.msra.mxu0 0
  %207 = vmatprep.subr.bf16.mxu0 0
  %208 = vmatpush1.bf16.msra.mxu0 0
  %209 = vmatprep.subr.bf16.mxu0 0
  %210 = vmatpush1.bf16.msra.mxu0 0
  %211 = vmatprep.subr.bf16.mxu0 0
  %212 = vmatpush1.bf16.msra.mxu0 0
  %213 = vmatprep.subr.bf16.mxu0 0
  %214 = vmatpush1.bf16.msra.mxu0 0
  %215 = vmatprep.subr.bf16.mxu0 0
  %216 = vmatpush1.bf16.msra.mxu0 0
  %217 = vmatprep.subr.bf16.mxu0 0
  %218 = vmatpush1.bf16.msra.mxu0 0
  %219 = vmatprep.mubr.bf16.mxu0 0
  %220 = vmatmul.mubr.bf16.gmra.mrb[0].mxu0 %v123
  %v221 = vpop.f32.mrb[0].mxu0
  %v222 = vadd.f32 0.0, %v221
  %v223 = vpop.f32.mrb[0].mxu0
  %v224 = vpop.f32.mrb[0].mxu0
  %v225 = vadd.f32 0.0, %v224
  %v226 = vpop.f32.mrb[0].mxu0
  %227 = vmatprep.mubr.bf16.mxu0 0
  %228 = vmatmul.mubr.bf16.gmra.mrb[0].mxu0 %v124
  %v229 = vpop.f32.mrb[0].mxu0
  %v230 = vadd.f32 0.0, %v229
  %v231 = vpop.f32.mrb[0].mxu0
  %v232 = vpop.f32.mrb[0].mxu0
  %v233 = vadd.f32 0.0, %v232
  %v234 = vpop.f32.mrb[0].mxu0
  %235 = vmatprep.mubr.bf16.mxu0 0
  %236 = vmatmul.mubr.bf16.gmra.mrb[0].mxu0 %v125
  %v237 = vpop.f32.mrb[0].mxu0
  %v238 = vadd.f32 0.0, %v237
  %v239 = vpop.f32.mrb[0].mxu0
  %v240 = vpop.f32.mrb[0].mxu0
  %v241 = vadd.f32 0.0, %v240
  %v242 = vpop.f32.mrb[0].mxu0
  %243 = vmatprep.mubr.bf16.mxu0 0
  %244 = vmatmul.mubr.bf16.gmra.mrb[0].mxu0 %v126
  %v245 = vpop.f32.mrb[0].mxu0
  %v246 = vadd.f32 0.0, %v245
  %v247 = vpop.f32.mrb[0].mxu0
  %v248 = vpop.f32.mrb[0].mxu0
  %v249 = vadd.f32 0.0, %v248
  %v250 = vpop.f32.mrb[0].mxu0
  %251 = vmatprep.mubr.bf16.mxu0 0
  %252 = vmatmul.mubr.bf16.gmra.mrb[0].mxu0 %v127
  %v253 = vpop.f32.mrb[0].mxu0
  %v254 = vadd.f32 0.0, %v253
  %v255 = vpop.f32.mrb[0].mxu0
  %v256 = vpop.f32.mrb[0].mxu0
  %v257 = vadd.f32 0.0, %v256
  %v258 = vpop.f32.mrb[0].mxu0
  %259 = vmatprep.mubr.bf16.mxu0 0
  %260 = vmatmul.mubr.bf16.gmra.mrb[0].mxu0 %v128
  %v261 = vpop.f32.mrb[0].mxu0
  %v262 = vadd.f32 0.0, %v261
  %v263 = vpop.f32.mrb[0].mxu0
  %v264 = vpop.f32.mrb[0].mxu0
  %v265 = vadd.f32 0.0, %v264
  %v266 = vpop.f32.mrb[0].mxu0
  %267 = vmatprep.mubr.bf16.mxu0 0
  %268 = vmatmul.mubr.bf16.gmra.mrb[0].mxu0 %v129
  %v269 = vpop.f32.mrb[0].mxu0
  %v270 = vadd.f32 0.0, %v269
  %v271 = vpop.f32.mrb[0].mxu0
  %v272 = vpop.f32.mrb[0].mxu0
  %v273 = vadd.f32 0.0, %v272
  %v274 = vpop.f32.mrb[0].mxu0
  %275 = vmatprep.mubr.bf16.mxu0 0
  %276 = vmatmul.mubr.bf16.gmra.mrb[0].mxu0 %v130
  %v277 = vpop.f32.mrb[0].mxu0
  %v278 = vadd.f32 0.0, %v277
  %v279 = vpop.f32.mrb[0].mxu0
  %v280 = vpop.f32.mrb[0].mxu0
  %v281 = vadd.f32 0.0, %v280
  %v282 = vpop.f32.mrb[0].mxu0
  %283 = vdwg.mxu0
  %v284 = vadd.f32 %v43, %v222
  %v285 = vadd.f32 %v44, %v225
  %v286 = vadd.f32 %v45, %v230
  %v287 = vadd.f32 %v46, %v233
  %v288 = vadd.f32 %v47, %v238
  %v289 = vadd.f32 %v48, %v241
  %v290 = vadd.f32 %v49, %v246
  %v291 = vadd.f32 %v50, %v249
  %v292 = vadd.f32 %v51, %v254
  %v293 = vadd.f32 %v52, %v257
  %v294 = vadd.f32 %v53, %v262
  %v295 = vadd.f32 %v54, %v265
  %v296 = vadd.f32 %v55, %v270
  %v297 = vadd.f32 %v56, %v273
  %v298 = vadd.f32 %v57, %v278
  %v299 = vadd.f32 %v58, %v281
  %vm300 = vcmask 130048
  %301 = vst.msk [vmem:[#allocation2] sm:$0xff] %vm300, %v284
  %302 = vst.msk [vmem:[#allocation2 + $0x8] sm:$0xff] %vm300, %v285
  %303 = vst.msk [vmem:[#allocation2 + $0x10] sm:$0xff] %vm300, %v286
  %304 = vst.msk [vmem:[#allocation2 + $0x18] sm:$0xff] %vm300, %v287
  %305 = vst.msk [vmem:[#allocation2 + $0x20] sm:$0xff] %vm300, %v288
  %306 = vst.msk [vmem:[#allocation2 + $0x28] sm:$0xff] %vm300, %v289
  %307 = vst.msk [vmem:[#allocation2 + $0x30] sm:$0xff] %vm300, %v290
  %308 = vst.msk [vmem:[#allocation2 + $0x38] sm:$0xff] %vm300, %v291
  %309 = vst.msk [vmem:[#allocation2 + $0x40] sm:$0xff] %vm300, %v292
  %310 = vst.msk [vmem:[#allocation2 + $0x48] sm:$0xff] %vm300, %v293
  %311 = vst.msk [vmem:[#allocation2 + $0x50] sm:$0xff] %vm300, %v294
  %312 = vst.msk [vmem:[#allocation2 + $0x58] sm:$0xff] %vm300, %v295
  %313 = vst.msk [vmem:[#allocation2 + $0x60] sm:$0xff] %vm300, %v296
  %314 = vst.msk [vmem:[#allocation2 + $0x68] sm:$0xff] %vm300, %v297
  %315 = vst.msk [vmem:[#allocation2 + $0x70] sm:$0xff] %vm300, %v298
  %316 = vst.msk [vmem:[#allocation2 + $0x78] sm:$0xff] %vm300, %v299
  // Predicated region
  $region26: #{encoder_forward.7} parent=0 // pred_check
    %p317 = pneg %p22
  $region27: #{encoder_forward.7} parent=0 // pred_check_branch
    %319 = sbr.rel (%p317) target = $region29
  $region28: #{encoder_forward.7} parent=0 // pred_region
    %v320 = vld [vmem:[#allocation2] sm:$0xff]
    %v321 = vld [vmem:[#allocation2 + $0x8] sm:$0xff]
    %v322 = vld [vmem:[#allocation2 + $0x10] sm:$0xff]
    %v323 = vld [vmem:[#allocation2 + $0x18] sm:$0xff]
    %v324 = vld [vmem:[#allocation2 + $0x20] sm:$0xff]
    %v325 = vld [vmem:[#allocation2 + $0x28] sm:$0xff]
    %v326 = vld [vmem:[#allocation2 + $0x30] sm:$0xff]
    %v327 = vld [vmem:[#allocation2 + $0x38] sm:$0xff]
    %v328 = vld [vmem:[#allocation2 + $0x40] sm:$0xff]
    %v329 = vld [vmem:[#allocation2 + $0x48] sm:$0xff]
    %v330 = vld [vmem:[#allocation2 + $0x50] sm:$0xff]
    %v331 = vld [vmem:[#allocation2 + $0x58] sm:$0xff]
    %v332 = vld [vmem:[#allocation2 + $0x60] sm:$0xff]
    %v333 = vld [vmem:[#allocation2 + $0x68] sm:$0xff]
    %v334 = vld [vmem:[#allocation2 + $0x70] sm:$0xff]
    %v335 = vld [vmem:[#allocation2 + $0x78] sm:$0xff]
    %v336 = vld [vmem:[%s2] sm:$0xff]
    %v337 = vld [vmem:[%s2 + $0x8] sm:$0xff]
    %v338 = vld [vmem:[%s2 + $0x10] sm:$0xff]
    %v339 = vld [vmem:[%s2 + $0x18] sm:$0xff]
    %v340 = vld [vmem:[%s2 + $0x20] sm:$0xff]
    %v341 = vld [vmem:[%s2 + $0x28] sm:$0xff]
    %v342 = vld [vmem:[%s2 + $0x30] sm:$0xff]
    %v343 = vld [vmem:[%s2 + $0x38] sm:$0xff]
    %v344 = vld [vmem:[%s2 + $0x40] sm:$0xff]
    %v345 = vld [vmem:[%s2 + $0x48] sm:$0xff]
    %v346 = vld [vmem:[%s2 + $0x50] sm:$0xff]
    %v347 = vld [vmem:[%s2 + $0x58] sm:$0xff]
    %v348 = vld [vmem:[%s2 + $0x60] sm:$0xff]
    %v349 = vld [vmem:[%s2 + $0x68] sm:$0xff]
    %v350 = vld [vmem:[%s2 + $0x70] sm:$0xff]
    %v351 = vld [vmem:[%s2 + $0x78] sm:$0xff]
    %353 = vset.pattern.permute.xlu0 0
    %354 = vperm.xlu0 %353, %v336
    %v355 = vpop.permute.xlu0 %354
    %358 = vset.pattern.permute.xlu0 0
    %359 = vperm.xlu0 %358, %v337
    %v360 = vpop.permute.xlu0 %359
    %363 = vset.pattern.permute.xlu0 0
    %364 = vperm.xlu0 %363, %v338
    %v365 = vpop.permute.xlu0 %364
    %368 = vset.pattern.permute.xlu0 0
    %369 = vperm.xlu0 %368, %v339
    %v370 = vpop.permute.xlu0 %369
    %373 = vset.pattern.permute.xlu0 0
    %374 = vperm.xlu0 %373, %v340
    %v375 = vpop.permute.xlu0 %374
    %378 = vset.pattern.permute.xlu0 0
    %379 = vperm.xlu0 %378, %v341
    %v380 = vpop.permute.xlu0 %379
    %383 = vset.pattern.permute.xlu0 0
    %384 = vperm.xlu0 %383, %v342
    %v385 = vpop.permute.xlu0 %384
    %388 = vset.pattern.permute.xlu0 0
    %389 = vperm.xlu0 %388, %v343
    %v390 = vpop.permute.xlu0 %389
    %393 = vset.pattern.permute.xlu0 0
    %394 = vperm.xlu0 %393, %v344
    %v395 = vpop.permute.xlu0 %394
    %398 = vset.pattern.permute.xlu0 0
    %399 = vperm.xlu0 %398, %v345
    %v400 = vpop.permute.xlu0 %399
    %403 = vset.pattern.permute.xlu0 0
    %404 = vperm.xlu0 %403, %v346
    %v405 = vpop.permute.xlu0 %404
    %408 = vset.pattern.permute.xlu0 0
    %409 = vperm.xlu0 %408, %v347
    %v410 = vpop.permute.xlu0 %409
    %413 = vset.pattern.permute.xlu0 0
    %414 = vperm.xlu0 %413, %v348
    %v415 = vpop.permute.xlu0 %414
    %418 = vset.pattern.permute.xlu0 0
    %419 = vperm.xlu0 %418, %v349
    %v420 = vpop.permute.xlu0 %419
    %423 = vset.pattern.permute.xlu0 0
    %424 = vperm.xlu0 %423, %v350
    %v425 = vpop.permute.xlu0 %424
    %428 = vset.pattern.permute.xlu0 0
    %429 = vperm.xlu0 %428, %v351
    %v430 = vpop.permute.xlu0 %429
    %v432 = vmul.f32 %v320, %v355
    %v433 = vmul.f32 %v321, %v360
    %v434 = vmul.f32 %v322, %v365
    %v435 = vmul.f32 %v323, %v370
    %v436 = vmul.f32 %v324, %v375
    %v437 = vmul.f32 %v325, %v380
    %v438 = vmul.f32 %v326, %v385
    %v439 = vmul.f32 %v327, %v390
    %v440 = vmul.f32 %v328, %v395
    %v441 = vmul.f32 %v329, %v400
    %v442 = vmul.f32 %v330, %v405
    %v443 = vmul.f32 %v331, %v410
    %v444 = vmul.f32 %v332, %v415
    %v445 = vmul.f32 %v333, %v420
    %v446 = vmul.f32 %v334, %v425
    %v447 = vmul.f32 %v335, %v430
    %v448 = vld [vmem:[%s3] sm:$0x1]
    %v450 = vlaneseq
    %v451 = vshrl.u32 %v450, 7
    %v452 = vsub.s32 0, %v451
    %v453 = vrot.slane %v448, %v452
    %v455 = vadd.f32 %v432, %v453
    %v456 = vadd.f32 %v433, %v453
    %v457 = vadd.f32 %v434, %v453
    %v458 = vadd.f32 %v435, %v453
    %v459 = vadd.f32 %v436, %v453
    %v460 = vadd.f32 %v437, %v453
    %v461 = vadd.f32 %v438, %v453
    %v462 = vadd.f32 %v439, %v453
    %v463 = vadd.f32 %v440, %v453
    %v464 = vadd.f32 %v441, %v453
    %v465 = vadd.f32 %v442, %v453
    %v466 = vadd.f32 %v443, %v453
    %v467 = vadd.f32 %v444, %v453
    %v468 = vadd.f32 %v445, %v453
    %v469 = vadd.f32 %v446, %v453
    %v470 = vadd.f32 %v447, %v453
    %s471 = sld [smem:[#allocation3]]
    %vm472 = vcmp.gt.f32.partialorder %v455, 0.0
    %vm473 = vcmp.gt.f32.partialorder %v456, 0.0
    %vm474 = vcmp.gt.f32.partialorder %v457, 0.0
    %vm475 = vcmp.gt.f32.partialorder %v458, 0.0
    %vm476 = vcmp.gt.f32.partialorder %v459, 0.0
    %vm477 = vcmp.gt.f32.partialorder %v460, 0.0
    %vm478 = vcmp.gt.f32.partialorder %v461, 0.0
    %vm479 = vcmp.gt.f32.partialorder %v462, 0.0
    %vm480 = vcmp.gt.f32.partialorder %v463, 0.0
    %vm481 = vcmp.gt.f32.partialorder %v464, 0.0
    %vm482 = vcmp.gt.f32.partialorder %v465, 0.0
    %vm483 = vcmp.gt.f32.partialorder %v466, 0.0
    %vm484 = vcmp.gt.f32.partialorder %v467, 0.0
    %vm485 = vcmp.gt.f32.partialorder %v468, 0.0
    %vm486 = vcmp.gt.f32.partialorder %v469, 0.0
    %vm487 = vcmp.gt.f32.partialorder %v470, 0.0
    %v488 = vstv %s471
    %v489 = vmul.f32 %v488, %v455
    %v490 = vmul.f32 %v488, %v456
    %v491 = vmul.f32 %v488, %v457
    %v492 = vmul.f32 %v488, %v458
    %v493 = vmul.f32 %v488, %v459
    %v494 = vmul.f32 %v488, %v460
    %v495 = vmul.f32 %v488, %v461
    %v496 = vmul.f32 %v488, %v462
    %v497 = vmul.f32 %v488, %v463
    %v498 = vmul.f32 %v488, %v464
    %v499 = vmul.f32 %v488, %v465
    %v500 = vmul.f32 %v488, %v466
    %v501 = vmul.f32 %v488, %v467
    %v502 = vmul.f32 %v488, %v468
    %v503 = vmul.f32 %v488, %v469
    %v504 = vmul.f32 %v488, %v470
    %v505 = vsel %vm472, %v455, %v489
    %v506 = vsel %vm473, %v456, %v490
    %v507 = vsel %vm474, %v457, %v491
    %v508 = vsel %vm475, %v458, %v492
    %v509 = vsel %vm476, %v459, %v493
    %v510 = vsel %vm477, %v460, %v494
    %v511 = vsel %vm478, %v461, %v495
    %v512 = vsel %vm479, %v462, %v496
    %v513 = vsel %vm480, %v463, %v497
    %v514 = vsel %vm481, %v464, %v498
    %v515 = vsel %vm482, %v465, %v499
    %v516 = vsel %vm483, %v466, %v500
    %v517 = vsel %vm484, %v467, %v501
    %v518 = vsel %vm485, %v468, %v502
    %v519 = vsel %vm486, %v469, %v503
    %v520 = vsel %vm487, %v470, %v504
    %521 = vst.msk [vmem:[%s5] sm:$0xff] %vm300, %v505
    %522 = vst.msk [vmem:[%s5 + $0x8] sm:$0xff] %vm300, %v506
    %523 = vst.msk [vmem:[%s5 + $0x10] sm:$0xff] %vm300, %v507
    %524 = vst.msk [vmem:[%s5 + $0x18] sm:$0xff] %vm300, %v508
    %525 = vst.msk [vmem:[%s5 + $0x20] sm:$0xff] %vm300, %v509
    %526 = vst.msk [vmem:[%s5 + $0x28] sm:$0xff] %vm300, %v510
    %527 = vst.msk [vmem:[%s5 + $0x30] sm:$0xff] %vm300, %v511
    %528 = vst.msk [vmem:[%s5 + $0x38] sm:$0xff] %vm300, %v512
    %529 = vst.msk [vmem:[%s5 + $0x40] sm:$0xff] %vm300, %v513
    %530 = vst.msk [vmem:[%s5 + $0x48] sm:$0xff] %vm300, %v514
    %531 = vst.msk [vmem:[%s5 + $0x50] sm:$0xff] %vm300, %v515
    %532 = vst.msk [vmem:[%s5 + $0x58] sm:$0xff] %vm300, %v516
    %533 = vst.msk [vmem:[%s5 + $0x60] sm:$0xff] %vm300, %v517
    %534 = vst.msk [vmem:[%s5 + $0x68] sm:$0xff] %vm300, %v518
    %535 = vst.msk [vmem:[%s5 + $0x70] sm:$0xff] %vm300, %v519
    %536 = vst.msk [vmem:[%s5 + $0x78] sm:$0xff] %vm300, %v520
  $region29: #{encoder_forward.7} parent=0 // pred_fallthru
    _
  // Predicated region
  $region30: #{encoder_forward.7} parent=0 // pred_check
    _
  $region31: #{encoder_forward.7} parent=0 // pred_check_branch
    %538 = sbr.rel (0) target = $region33
  $region32: #{encoder_forward.7} parent=0 // pred_region
    _
  $region33: #{encoder_forward.7} parent=0 // pred_fallthru
    _
  // Predicated region
  $region34: #{encoder_forward.7} parent=0 // pred_check
    _
  $region35: #{encoder_forward.7} parent=0 // pred_check_branch
    %540 = sbr.rel (0) target = $region37
  $region36: #{encoder_forward.7} parent=0 // pred_region
    _
  $region37: #{encoder_forward.7} parent=0 // pred_fallthru
    _

</llo_original>
